<compile_context>
chip_gen: v7x
topology: tpu7x:2x2x1
jax: 0.10.0
libtpu: 0.0.40
codegen_flags: <defaults>
</compile_context>

<pallas_src>
import jax
import jax.numpy as jnp
import numpy as np
from jax.experimental import pallas as pl
from jax.experimental.pallas import tpu as pltpu

# ---- hyper-parameters consistent with the module __init__ ----
OBS_DIM      = 32     # dim of image_encoder(obs['image']) output
ACTION_DIM   = 8
HIDDEN_DIM   = 32
HIDDEN_DEPTH = 2      # -> one extra (Linear, ReLU) hidden block after the LN block
PROPRIO_DIM  = 8
PROPRIO_EXP  = 16     # proprio_expanded_dim
LN_EPS       = 1e-5   # torch.nn.LayerNorm default

IN_DIM = OBS_DIM + PROPRIO_EXP + ACTION_DIM   # mlp_critic input dim (56)
H2     = 2 * HIDDEN_DIM                       # fused (two-head) hidden width (64)
X_DIM  = OBS_DIM + ACTION_DIM + PROPRIO_DIM   # packed activation width (48)
BT     = 128                                  # batch tile (sublane-dense, MXU-friendly)

# ---- compact packed parameter slab: (136, 128) f32 ----
R_WXA  = 0      # 48 rows : lanes 0:64 = WP1_ext,  lanes 64:128 = W1 (img+action rows)
R_W1P  = 48     # 16 rows : lanes 0:64 = W1 (proprio-expanded rows)
R_BIG  = 64     # 64 rows : lanes 0:64 = W2 block-diag, 64:80 = WP2, 80:82 = W3
R_BIAS = 128    #  8 rows : one bias / LN-affine vector per row
SLAB_ROWS = 136
SLAB_COLS = 128

WP2_LANE = 64   # lane offset of the proprio layer-2 weight inside R_BIG rows
Q_LANE   = 80   # lanes [80, 81] of the output tile hold [q1 | q2]

RB_BP1  = R_BIAS + 0
RB_BP2  = R_BIAS + 1
RB_B1   = R_BIAS + 2
RB_G    = R_BIAS + 3
RB_BETA = R_BIAS + 4
RB_B2   = R_BIAS + 5
RB_B3   = R_BIAS + 6


def critic_kernel(x_ref, p_ref, q_ref):
    # x = [obs_img(32) | action(8) | raw_proprio(8)]; padded batch rows are zeros.
    x = x_ref[...]                                                     # (BT, 48)

    # ---- stage 1: one fused matmul over the raw inputs (no slicing of x) ----
    # lanes 0:64  = proprios @ wp1        (rows 0:40 of that lane-group are zero)
    # lanes 64:128 = img/action part of the fused first Linear of both heads
    wxa = p_ref[R_WXA:R_WXA + X_DIM, :]                                # (48, 128)
    t = jnp.dot(x, wxa, preferred_element_type=jnp.float32)            # (BT, 128)

    bp1 = p_ref[RB_BP1:RB_BP1 + 1, 0:H2]                               # (1, 64)
    p1 = jnp.maximum(t[:, 0:H2] + bp1, 0.0)                            # (BT, 64)
    h_ia = t[:, H2:2 * H2]                                             # (BT, 64) (rotate overlaps stage 2)

    # ---- stage 2: proprio layer 2 ----
    wp2 = p_ref[R_BIG:R_BIG + H2, WP2_LANE:WP2_LANE + PROPRIO_EXP]     # (64, 16)
    bp2 = p_ref[RB_BP2:RB_BP2 + 1, 0:PROPRIO_EXP]                      # (1, 16)
    p2 = jnp.maximum(jnp.dot(p1, wp2, preferred_element_type=jnp.float32) + bp2, 0.0)

    # ---- stage 3: remaining rows of the fused first Linear (both heads) ----
    w1p = p_ref[R_W1P:R_W1P + PROPRIO_EXP, 0:H2]                       # (16, 64)
    b1  = p_ref[RB_B1:RB_B1 + 1, 0:H2]
    h = h_ia + jnp.dot(p2, w1p, preferred_element_type=jnp.float32) + b1   # (BT, 64) [head A | head B]

    # ---- stage 4: per-head LayerNorm via a lane mask (no sub-vreg slice / concat) ----
    lane = jax.lax.broadcasted_iota(jnp.int32, (1, H2), 1)             # (1, 64)
    in_a = lane < HIDDEN_DIM                                           # head-A lanes

    h_a = jnp.where(in_a, h, 0.0)
    h_b = h - h_a
    sum_a = jnp.sum(h_a, axis=-1, keepdims=True)                       # (BT, 1)
    sum_b = jnp.sum(h_b, axis=-1, keepdims=True)
    mu = jnp.where(in_a, sum_a, sum_b) * (1.0 / HIDDEN_DIM)            # (BT, 64)
    cen = h - mu
    c_a = jnp.where(in_a, cen, 0.0)
    c_b = cen - c_a
    ss_a = jnp.sum(c_a * c_a, axis=-1, keepdims=True)
    ss_b = jnp.sum(c_b * c_b, axis=-1, keepdims=True)
    var = jnp.where(in_a, ss_a, ss_b) * (1.0 / HIDDEN_DIM)             # biased var (torch default)

    g    = p_ref[RB_G:RB_G + 1, 0:H2]
    beta = p_ref[RB_BETA:RB_BETA + 1, 0:H2]
    h1 = jnp.maximum(cen * jax.lax.rsqrt(var + LN_EPS) * g + beta, 0.0)

    # ---- stage 5: fused hidden Linear (block-diagonal (64,64)) + ReLU ----
    w2 = p_ref[R_BIG:R_BIG + H2, 0:H2]                                 # (64, 64)
    b2 = p_ref[RB_B2:RB_B2 + 1, 0:H2]
    h2 = jnp.maximum(jnp.dot(h1, w2, preferred_element_type=jnp.float32) + b2, 0.0)

    # ---- stage 6: lane-dense output: full 128-lane matmul; q lives in lanes 80:82 ----
    big = p_ref[R_BIG:R_BIG + H2, :]                                   # (64, 128)
    b3  = p_ref[RB_B3:RB_B3 + 1, :]                                    # (1, 128)
    q_ref[...] = jnp.dot(h2, big, preferred_element_type=jnp.float32) + b3


def double_q_critic_with_encoder(obs_img, proprios, action, packed_params):
    batch = obs_img.shape[0]
    assert proprios.shape == (batch, PROPRIO_DIM), proprios.shape
    assert action.shape == (batch, ACTION_DIM), action.shape
    assert obs_img.shape == (batch, OBS_DIM), obs_img.shape
    assert packed_params.shape == (SLAB_ROWS, SLAB_COLS), packed_params.shape

    # free lane-concat in XLA -> one activation DMA per batch tile
    x = jnp.concatenate([obs_img, action, proprios], axis=-1).astype(jnp.float32)  # (B, 48)

    n_bt = pl.cdiv(batch, BT)
    b_pad = n_bt * BT
    if b_pad != batch:
        x = jnp.pad(x, ((0, b_pad - batch), (0, 0)))

    q = pl.pallas_call(
        critic_kernel,
        out_shape=jax.ShapeDtypeStruct((b_pad, 128), jnp.float32),
        grid=(n_bt,),
        in_specs=[pl.BlockSpec((BT, X_DIM), lambda i: (i, 0)),
                  # constant index_map -> weight slab stays resident across batch tiles
                  pl.BlockSpec((SLAB_ROWS, SLAB_COLS), lambda i: (0, 0))],
        out_specs=pl.BlockSpec((BT, 128), lambda i: (i, 0)),
        compiler_params=pltpu.CompilerParams(dimension_semantics=("parallel",)),
    )(x, packed_params)

    return q[:batch, Q_LANE:Q_LANE + 1], q[:batch, Q_LANE + 1:Q_LANE + 2]


# ----------------------- deterministic parameter init -----------------------
def _linear(key, fan_in, fan_out):
    kw, kb = jax.random.split(key)
    bound = 1.0 / np.sqrt(fan_in)
    w = jax.random.uniform(kw, (fan_in, fan_out), jnp.float32, -bound, bound)
    b = jax.random.uniform(kb, (1, fan_out), jnp.float32, -bound, bound)
    return w, b


def init_params(key):
    keys = jax.random.split(key, 4)
    wp1, bp1 = _linear(keys[0], PROPRIO_DIM, 64)
    wp2, bp2 = _linear(keys[1], 64, PROPRIO_EXP)

    def q_params(k):
        k1, k2, k3 = jax.random.split(k, 3)
        w1, b1 = _linear(k1, IN_DIM, HIDDEN_DIM)
        g    = jnp.ones((1, HIDDEN_DIM), jnp.float32)   # LayerNorm weight
        beta = jnp.zeros((1, HIDDEN_DIM), jnp.float32)  # LayerNorm bias
        w2, b2 = _linear(k2, HIDDEN_DIM, HIDDEN_DIM)
        w3, b3 = _linear(k3, HIDDEN_DIM, 1)
        return (w1, b1, g, beta, w2, b2, w3, b3)

    return (wp1, bp1, wp2, bp2) + q_params(keys[2]) + q_params(keys[3])


def pack_params(raw):
    """Pack all 20 parameter tensors into one compact lane-dense (136, 128) f32 slab."""
    (wp1, bp1, wp2, bp2,
     w1a, b1a, ga, bta, w2a, b2a, w3a, b3a,
     w1b, b1b, gb, btb, w2b, b2b, w3b, b3b) = [np.asarray(p, np.float32) for p in raw]
    H = HIDDEN_DIM
    slab = np.zeros((SLAB_ROWS, SLAB_COLS), np.float32)

    # rows 0:48 -- x-side weights; x row order is [img(32) | action(8) | proprio(8)]
    #   lanes 0:64 : zero-row-extended proprio layer-1 weight (only proprio rows non-zero)
    slab[R_WXA + OBS_DIM + ACTION_DIM:R_WXA + X_DIM, 0:64] = wp1
    #   lanes 64:128 : img+action rows of the fused first Linear; columns [head A | head B]
    #   (original per-head row order is [img 0:32 | proprio_exp 32:48 | action 48:56])
    slab[R_WXA:R_WXA + OBS_DIM, 64:64 + H]   = w1a[0:OBS_DIM]
    slab[R_WXA:R_WXA + OBS_DIM, 64 + H:128]  = w1b[0:OBS_DIM]
    slab[R_WXA + OBS_DIM:R_WXA + OBS_DIM + ACTION_DIM, 64:64 + H]  = w1a[OBS_DIM + PROPRIO_EXP:IN_DIM]
    slab[R_WXA + OBS_DIM:R_WXA + OBS_DIM + ACTION_DIM, 64 + H:128] = w1b[OBS_DIM + PROPRIO_EXP:IN_DIM]

    # rows 48:64 -- proprio-expanded rows of the fused first Linear
    slab[R_W1P:R_W1P + PROPRIO_EXP, 0:H]  = w1a[OBS_DIM:OBS_DIM + PROPRIO_EXP]
    slab[R_W1P:R_W1P + PROPRIO_EXP, H:H2] = w1b[OBS_DIM:OBS_DIM + PROPRIO_EXP]

    # rows 64:128 -- W2 (block-diag, lanes 0:64) | WP2 (lanes 64:80) | W3 (lanes 80:82)
    slab[R_BIG:R_BIG + H, 0:H]        = w2a
    slab[R_BIG + H:R_BIG + H2, H:H2]  = w2b
    slab[R_BIG:R_BIG + H2, WP2_LANE:WP2_LANE + PROPRIO_EXP] = wp2
    slab[R_BIG:R_BIG + H, Q_LANE]           = w3a[:, 0]
    slab[R_BIG + H:R_BIG + H2, Q_LANE + 1]  = w3b[:, 0]

    # rows 128:136 -- all biases / LayerNorm affine, one row each
    slab[RB_BP1, 0:64]           = bp1[0]
    slab[RB_BP2, 0:PROPRIO_EXP]  = bp2[0]
    slab[RB_B1, 0:H]   = b1a[0]; slab[RB_B1, H:H2]   = b1b[0]
    slab[RB_G, 0:H]    = ga[0];  slab[RB_G, H:H2]    = gb[0]
    slab[RB_BETA, 0:H] = bta[0]; slab[RB_BETA, H:H2] = btb[0]
    slab[RB_B2, 0:H]   = b2a[0]; slab[RB_B2, H:H2]   = b2b[0]
    slab[RB_B3, Q_LANE]     = b3a[0, 0]
    slab[RB_B3, Q_LANE + 1] = b3b[0, 0]
    return jnp.asarray(slab)


# ----------------------- pure-JAX reference for validation ------------------
def reference_forward(obs_img, proprios, action, params):
    (wp1, bp1, wp2, bp2,
     w1a, b1a, ga, bta, w2a, b2a, w3a, b3a,
     w1b, b1b, gb, btb, w2b, b2b, w3b, b3b) = params

    p = jnp.maximum(proprios @ wp1 + bp1, 0.0)
    p = jnp.maximum(p @ wp2 + bp2, 0.0)
    obs = jnp.concatenate([obs_img, p], axis=-1)          # torch.hstack
    oa = jnp.concatenate([obs, action], axis=-1)          # torch.cat(..., -1)

    def head(w1, b1, g, beta, w2, b2, w3, b3):
        h = oa @ w1 + b1
        mu = jnp.mean(h, -1, keepdims=True)
        var = jnp.mean(jnp.square(h - mu), -1, keepdims=True)
        h = (h - mu) * jax.lax.rsqrt(var + LN_EPS) * g + beta
        h = jnp.maximum(h, 0.0)
        h = jnp.maximum(h @ w2 + b2, 0.0)
        return h @ w3 + b3

    return (head(w1a, b1a, ga, bta, w2a, b2a, w3a, b3a),
            head(w1b, b1b, gb, btb, w2b, b2b, w3b, b3b))


if __name__ == "__main__":
    key = jax.random.PRNGKey(0)
    k_obs, k_prop, k_act, k_params = jax.random.split(key, 4)

    batch = 2
    obs_img  = jax.random.normal(k_obs,  (batch, OBS_DIM),     jnp.float32)
    proprios = jax.random.normal(k_prop, (batch, PROPRIO_DIM), jnp.float32)
    action   = jax.random.normal(k_act,  (batch, ACTION_DIM),  jnp.float32)
    raw_params = init_params(k_params)
    packed     = pack_params(raw_params)

    q1, q2 = double_q_critic_with_encoder(obs_img, proprios, action, packed)
    jax.block_until_ready((q1, q2))

    q1_ref, q2_ref = reference_forward(obs_img, proprios, action, raw_params)
    assert q1.shape == (batch, 1) and q2.shape == (batch, 1)
    np.testing.assert_allclose(np.asarray(q1), np.asarray(q1_ref), rtol=1e-5, atol=1e-5)
    np.testing.assert_allclose(np.asarray(q2), np.asarray(q2_ref), rtol=1e-5, atol=1e-5)
    print("KERNEL_OK")
</pallas_src>

<mosaic_0001>
module attributes {stable_mosaic.version = 11 : i64} {
  func.func @critic_kernel(%arg0: i32, %arg1: memref<128x48xf32, #tpu.memory_space<vmem>>, %arg2: memref<136x128xf32, #tpu.memory_space<vmem>>, %arg3: memref<128x128xf32, #tpu.memory_space<vmem>>) attributes {dimension_semantics = [#tpu.dimension_semantics<parallel>], iteration_bounds = array<i64: 1>, scalar_prefetch = 0 : i64, scratch_operands = 0 : i64, tpu.core_type = #tpu.core_type<tc>, window_params = [{transform_indices = @transform_0, window_bounds = array<i64: 128, 48>}, {pipeline_mode = #tpu.pipeline_mode<synchronous>, transform_indices = @transform_1, window_bounds = array<i64: 136, 128>}, {transform_indices = @transform_2, window_bounds = array<i64: 128, 128>}]} {
    %c0 = arith.constant 0 : index
    %c0_0 = arith.constant 0 : index
    %0 = vector.load %arg1[%c0, %c0_0] : memref<128x48xf32, #tpu.memory_space<vmem>>, vector<128x48xf32>
    %c0_1 = arith.constant 0 : index
    %c0_2 = arith.constant 0 : index
    %1 = vector.load %arg2[%c0_1, %c0_2] : memref<136x128xf32, #tpu.memory_space<vmem>>, vector<48x128xf32>
    %cst = arith.constant dense<0.000000e+00> : vector<128x128xf32>
    %2 = tpu.matmul %0, %1, %cst {dimension_numbers = #tpu.dot_dimension_numbers<[1], [0], [0], [1], [0, 0, 1, 1], [], []>} : vector<128x48xf32>, vector<48x128xf32>, vector<128x128xf32> -> vector<128x128xf32>
    %c128 = arith.constant 128 : index
    %c0_3 = arith.constant 0 : index
    %3 = vector.load %arg2[%c128, %c0_3] : memref<136x128xf32, #tpu.memory_space<vmem>>, vector<1x64xf32>
    %4 = vector.extract_strided_slice %2 {offsets = [0, 0], sizes = [128, 64], strides = [1, 1]} : vector<128x128xf32> to vector<128x64xf32>
    %5 = vector.broadcast %3 : vector<1x64xf32> to vector<128x64xf32>
    %6 = arith.addf %4, %5 : vector<128x64xf32>
    %cst_4 = arith.constant 0.000000e+00 : f32
    %7 = vector.broadcast %cst_4 : f32 to vector<128x64xf32>
    %8 = arith.maximumf %6, %7 : vector<128x64xf32>
    %9 = vector.extract_strided_slice %2 {offsets = [0, 64], sizes = [128, 64], strides = [1, 1]} : vector<128x128xf32> to vector<128x64xf32>
    %c64 = arith.constant 64 : index
    %c64_5 = arith.constant 64 : index
    %10 = vector.load %arg2[%c64, %c64_5] : memref<136x128xf32, #tpu.memory_space<vmem>>, vector<64x16xf32>
    %c129 = arith.constant 129 : index
    %c0_6 = arith.constant 0 : index
    %11 = vector.load %arg2[%c129, %c0_6] : memref<136x128xf32, #tpu.memory_space<vmem>>, vector<1x16xf32>
    %cst_7 = arith.constant dense<0.000000e+00> : vector<128x16xf32>
    %12 = tpu.matmul %8, %10, %cst_7 {dimension_numbers = #tpu.dot_dimension_numbers<[1], [0], [0], [1], [0, 0, 1, 1], [], []>} : vector<128x64xf32>, vector<64x16xf32>, vector<128x16xf32> -> vector<128x16xf32>
    %13 = vector.broadcast %11 : vector<1x16xf32> to vector<128x16xf32>
    %14 = arith.addf %12, %13 : vector<128x16xf32>
    %cst_8 = arith.constant 0.000000e+00 : f32
    %15 = vector.broadcast %cst_8 : f32 to vector<128x16xf32>
    %16 = arith.maximumf %14, %15 : vector<128x16xf32>
    %c48 = arith.constant 48 : index
    %c0_9 = arith.constant 0 : index
    %17 = vector.load %arg2[%c48, %c0_9] : memref<136x128xf32, #tpu.memory_space<vmem>>, vector<16x64xf32>
    %c130 = arith.constant 130 : index
    %c0_10 = arith.constant 0 : index
    %18 = vector.load %arg2[%c130, %c0_10] : memref<136x128xf32, #tpu.memory_space<vmem>>, vector<1x64xf32>
    %cst_11 = arith.constant dense<0.000000e+00> : vector<128x64xf32>
    %19 = tpu.matmul %16, %17, %cst_11 {dimension_numbers = #tpu.dot_dimension_numbers<[1], [0], [0], [1], [0, 0, 1, 1], [], []>} : vector<128x16xf32>, vector<16x64xf32>, vector<128x64xf32> -> vector<128x64xf32>
    %20 = arith.addf %9, %19 : vector<128x64xf32>
    %21 = vector.broadcast %18 : vector<1x64xf32> to vector<128x64xf32>
    %22 = arith.addf %20, %21 : vector<128x64xf32>
    %23 = tpu.iota {dimensions = array<i32: 1>} : vector<1x64xi32>
    %c32_i32 = arith.constant 32 : i32
    %24 = vector.broadcast %c32_i32 : i32 to vector<1x64xi32>
    %25 = arith.cmpi slt, %23, %24 : vector<1x64xi32>
    %cst_12 = arith.constant 0.000000e+00 : f32
    %26 = vector.shape_cast %25 : vector<1x64xi1> to vector<1x64xi1>
    %27 = vector.broadcast %26 : vector<1x64xi1> to vector<128x64xi1>
    %28 = vector.broadcast %cst_12 : f32 to vector<128x64xf32>
    %29 = arith.select %27, %22, %28 : vector<128x64xi1>, vector<128x64xf32>
    %30 = arith.subf %22, %29 : vector<128x64xf32>
    %cst_13 = arith.constant dense<0.000000e+00> : vector<128xf32>
    %31 = vector.multi_reduction <add>, %29, %cst_13 [1] : vector<128x64xf32> to vector<128xf32>
    %32 = vector.shape_cast %31 : vector<128xf32> to vector<128x1xf32>
    %cst_14 = arith.constant dense<0.000000e+00> : vector<128xf32>
    %33 = vector.multi_reduction <add>, %30, %cst_14 [1] : vector<128x64xf32> to vector<128xf32>
    %34 = vector.shape_cast %33 : vector<128xf32> to vector<128x1xf32>
    %35 = vector.shape_cast %25 : vector<1x64xi1> to vector<1x64xi1>
    %36 = vector.broadcast %35 : vector<1x64xi1> to vector<128x64xi1>
    %37 = vector.shape_cast %32 : vector<128x1xf32> to vector<128x1xf32>
    %38 = vector.broadcast %37 : vector<128x1xf32> to vector<128x64xf32>
    %39 = vector.shape_cast %34 : vector<128x1xf32> to vector<128x1xf32>
    %40 = vector.broadcast %39 : vector<128x1xf32> to vector<128x64xf32>
    %41 = arith.select %36, %38, %40 : vector<128x64xi1>, vector<128x64xf32>
    %cst_15 = arith.constant 3.125000e-02 : f32
    %42 = vector.broadcast %cst_15 : f32 to vector<128x64xf32>
    %43 = arith.mulf %41, %42 : vector<128x64xf32>
    %44 = arith.subf %22, %43 : vector<128x64xf32>
    %cst_16 = arith.constant 0.000000e+00 : f32
    %45 = vector.shape_cast %25 : vector<1x64xi1> to vector<1x64xi1>
    %46 = vector.broadcast %45 : vector<1x64xi1> to vector<128x64xi1>
    %47 = vector.broadcast %cst_16 : f32 to vector<128x64xf32>
    %48 = arith.select %46, %44, %47 : vector<128x64xi1>, vector<128x64xf32>
    %49 = arith.subf %44, %48 : vector<128x64xf32>
    %50 = arith.mulf %48, %48 : vector<128x64xf32>
    %cst_17 = arith.constant dense<0.000000e+00> : vector<128xf32>
    %51 = vector.multi_reduction <add>, %50, %cst_17 [1] : vector<128x64xf32> to vector<128xf32>
    %52 = vector.shape_cast %51 : vector<128xf32> to vector<128x1xf32>
    %53 = arith.mulf %49, %49 : vector<128x64xf32>
    %cst_18 = arith.constant dense<0.000000e+00> : vector<128xf32>
    %54 = vector.multi_reduction <add>, %53, %cst_18 [1] : vector<128x64xf32> to vector<128xf32>
    %55 = vector.shape_cast %54 : vector<128xf32> to vector<128x1xf32>
    %56 = vector.shape_cast %25 : vector<1x64xi1> to vector<1x64xi1>
    %57 = vector.broadcast %56 : vector<1x64xi1> to vector<128x64xi1>
    %58 = vector.shape_cast %52 : vector<128x1xf32> to vector<128x1xf32>
    %59 = vector.broadcast %58 : vector<128x1xf32> to vector<128x64xf32>
    %60 = vector.shape_cast %55 : vector<128x1xf32> to vector<128x1xf32>
    %61 = vector.broadcast %60 : vector<128x1xf32> to vector<128x64xf32>
    %62 = arith.select %57, %59, %61 : vector<128x64xi1>, vector<128x64xf32>
    %cst_19 = arith.constant 3.125000e-02 : f32
    %63 = vector.broadcast %cst_19 : f32 to vector<128x64xf32>
    %64 = arith.mulf %62, %63 : vector<128x64xf32>
    %c131 = arith.constant 131 : index
    %c0_20 = arith.constant 0 : index
    %65 = vector.load %arg2[%c131, %c0_20] : memref<136x128xf32, #tpu.memory_space<vmem>>, vector<1x64xf32>
    %c132 = arith.constant 132 : index
    %c0_21 = arith.constant 0 : index
    %66 = vector.load %arg2[%c132, %c0_21] : memref<136x128xf32, #tpu.memory_space<vmem>>, vector<1x64xf32>
    %cst_22 = arith.constant 9.99999974E-6 : f32
    %67 = vector.broadcast %cst_22 : f32 to vector<128x64xf32>
    %68 = arith.addf %64, %67 : vector<128x64xf32>
    %69 = math.rsqrt %68 : vector<128x64xf32>
    %70 = arith.mulf %44, %69 : vector<128x64xf32>
    %71 = vector.broadcast %65 : vector<1x64xf32> to vector<128x64xf32>
    %72 = arith.mulf %70, %71 : vector<128x64xf32>
    %73 = vector.broadcast %66 : vector<1x64xf32> to vector<128x64xf32>
    %74 = arith.addf %72, %73 : vector<128x64xf32>
    %cst_23 = arith.constant 0.000000e+00 : f32
    %75 = vector.broadcast %cst_23 : f32 to vector<128x64xf32>
    %76 = arith.maximumf %74, %75 : vector<128x64xf32>
    %c64_24 = arith.constant 64 : index
    %c0_25 = arith.constant 0 : index
    %77 = vector.load %arg2[%c64_24, %c0_25] : memref<136x128xf32, #tpu.memory_space<vmem>>, vector<64x64xf32>
    %c133 = arith.constant 133 : index
    %c0_26 = arith.constant 0 : index
    %78 = vector.load %arg2[%c133, %c0_26] : memref<136x128xf32, #tpu.memory_space<vmem>>, vector<1x64xf32>
    %cst_27 = arith.constant dense<0.000000e+00> : vector<128x64xf32>
    %79 = tpu.matmul %76, %77, %cst_27 {dimension_numbers = #tpu.dot_dimension_numbers<[1], [0], [0], [1], [0, 0, 1, 1], [], []>} : vector<128x64xf32>, vector<64x64xf32>, vector<128x64xf32> -> vector<128x64xf32>
    %80 = vector.broadcast %78 : vector<1x64xf32> to vector<128x64xf32>
    %81 = arith.addf %79, %80 : vector<128x64xf32>
    %cst_28 = arith.constant 0.000000e+00 : f32
    %82 = vector.broadcast %cst_28 : f32 to vector<128x64xf32>
    %83 = arith.maximumf %81, %82 : vector<128x64xf32>
    %c64_29 = arith.constant 64 : index
    %c0_30 = arith.constant 0 : index
    %84 = vector.load %arg2[%c64_29, %c0_30] : memref<136x128xf32, #tpu.memory_space<vmem>>, vector<64x128xf32>
    %c134 = arith.constant 134 : index
    %c0_31 = arith.constant 0 : index
    %85 = vector.load %arg2[%c134, %c0_31] : memref<136x128xf32, #tpu.memory_space<vmem>>, vector<1x128xf32>
    %cst_32 = arith.constant dense<0.000000e+00> : vector<128x128xf32>
    %86 = tpu.matmul %83, %84, %cst_32 {dimension_numbers = #tpu.dot_dimension_numbers<[1], [0], [0], [1], [0, 0, 1, 1], [], []>} : vector<128x64xf32>, vector<64x128xf32>, vector<128x128xf32> -> vector<128x128xf32>
    %87 = vector.broadcast %85 : vector<1x128xf32> to vector<128x128xf32>
    %88 = arith.addf %86, %87 : vector<128x128xf32>
    %c0_33 = arith.constant 0 : index
    %c0_34 = arith.constant 0 : index
    %89 = vector.load %arg3[%c0_33, %c0_34] : memref<128x128xf32, #tpu.memory_space<vmem>>, vector<128x128xf32>
    tpu.vector_store %arg3[%c0_33, %c0_34], %88 {strides = array<i32>} : memref<128x128xf32, #tpu.memory_space<vmem>>, vector<128x128xf32>,
    return
  }
  func.func @transform_0(%arg0: i32) -> (i32, i32) {
    %c0_i32 = arith.constant 0 : i32
    %c0_i32_0 = arith.constant 0 : i32
    return %arg0, %c0_i32 : i32, i32
  }
  func.func @transform_1(%arg0: i32) -> (i32, i32) {
    %c0_i32 = arith.constant 0 : i32
    %c0_i32_0 = arith.constant 0 : i32
    %c0_i32_1 = arith.constant 0 : i32
    return %c0_i32, %c0_i32_0 : i32, i32
  }
  func.func @transform_2(%arg0: i32) -> (i32, i32) {
    %c0_i32 = arith.constant 0 : i32
    %c0_i32_0 = arith.constant 0 : i32
    return %arg0, %c0_i32 : i32, i32
  }
}

</mosaic_0001>

<llo_original>
// kernel: tpu_custom_call.1
$region0: #{tpu_custom_call.1}
  #allocation0 [shape = 'u32[]', space=smem, size = 0x4, offset = 0x4, fixed_abs, tag = 'smem constant byte address 0x4 - core index']
  #allocation1 [shape = 'u32[144,128]{1,0:T(1,128)}', space=vmem, size = 0x12000, scoped, tag = 'internal scratch']
  %s0 = inlined_call_operand.vmem [shape: f32[128,48], index: 0, kind: input, shape index: {}]
  %s1 = inlined_call_operand.vmem [shape: f32[136,128], index: 1, kind: input, shape index: {}]
  %s2 = inlined_call_operand.hbm [shape: f32[128,128], index: 2, kind: output, shape index: {}]
  %s3 = sld [smem:[#allocation0]]
  $region18: #{tpu_custom_call.1} parent=0
    _
  %s5 = ssub.s32 1, %s3
  %s6 = scalar_select 0, %s5, %s3
  $region1: #{tpu_custom_call.1} parent=0
    #allocation2 [shape = 'u8[65536]{0}', space=vmem, size = 0x10000, scoped, tag = 'output window, operand 0, single buffered']
    #allocation3 [shape = 's32[1]{0}', space=sflag, size = 0x4, scoped, tag = 'scoped memory for tpu_custom_call.1']
    %7 = vsyncpa [#allocation3], 0
    // Predicated region
    $region2: #{tpu_custom_call.1} parent=1 // pred_check
      _
    $region3: #{tpu_custom_call.1} parent=1 // pred_check_branch
      %9 = sbr.rel (0) target = $region5
    $region4: #{tpu_custom_call.1} parent=1 // pred_region
      _
    $region5: #{tpu_custom_call.1} parent=1 // pred_fallthru
      _
    // Predicated region
    $region6: #{tpu_custom_call.1} parent=1 // pred_check
      _
    $region7: #{tpu_custom_call.1} parent=1 // pred_check_branch
      %11 = sbr.rel (0) target = $region9
    $region8: #{tpu_custom_call.1} parent=1 // pred_region
      _
    $region9: #{tpu_custom_call.1} parent=1 // pred_fallthru
      _
    %v12 = vld [vmem:[%s0] sm:$0xff]
    %v13 = vld [vmem:[%s0 + $0x8] sm:$0xff]
    %v14 = vld [vmem:[%s0 + $0x10] sm:$0xff]
    %v15 = vld [vmem:[%s0 + $0x18] sm:$0xff]
    %v16 = vld [vmem:[%s0 + $0x20] sm:$0xff]
    %v17 = vld [vmem:[%s0 + $0x28] sm:$0xff]
    %v18 = vld [vmem:[%s0 + $0x30] sm:$0xff]
    %v19 = vld [vmem:[%s0 + $0x38] sm:$0xff]
    %v20 = vld [vmem:[%s0 + $0x40] sm:$0xff]
    %v21 = vld [vmem:[%s0 + $0x48] sm:$0xff]
    %v22 = vld [vmem:[%s0 + $0x50] sm:$0xff]
    %v23 = vld [vmem:[%s0 + $0x58] sm:$0xff]
    %v24 = vld [vmem:[%s0 + $0x60] sm:$0xff]
    %v25 = vld [vmem:[%s0 + $0x68] sm:$0xff]
    %v26 = vld [vmem:[%s0 + $0x70] sm:$0xff]
    %v27 = vld [vmem:[%s0 + $0x78] sm:$0xff]
    %v28 = vld [vmem:[%s1] sm:$0xff]
    %v29 = vld [vmem:[%s1 + $0x8] sm:$0xff]
    %v30 = vld [vmem:[%s1 + $0x10] sm:$0xff]
    %v31 = vld [vmem:[%s1 + $0x18] sm:$0xff]
    %v32 = vld [vmem:[%s1 + $0x20] sm:$0xff]
    %v33 = vld [vmem:[%s1 + $0x28] sm:$0xff]
    %vm34 = vcmask 392192
    %v36 = vsel %vm34, %v12, 0
    %v39 = vsel %vm34, %v13, 0
    %v42 = vsel %vm34, %v14, 0
    %v45 = vsel %vm34, %v15, 0
    %v48 = vsel %vm34, %v16, 0
    %v51 = vsel %vm34, %v17, 0
    %v54 = vsel %vm34, %v18, 0
    %v57 = vsel %vm34, %v19, 0
    %v60 = vsel %vm34, %v20, 0
    %v63 = vsel %vm34, %v21, 0
    %v66 = vsel %vm34, %v22, 0
    %v69 = vsel %vm34, %v23, 0
    %v72 = vsel %vm34, %v24, 0
    %v75 = vsel %vm34, %v25, 0
    %v78 = vsel %vm34, %v26, 0
    %v81 = vsel %vm34, %v27, 0
    %83 = vmatprep.subr.mxu0 0.0
    %84 = vmatpush1.msra.mxu0 %v28
    %85 = vmatprep.subr.mxu0 0.0
    %86 = vmatpush1.msra.mxu0 %v29
    %87 = vmatprep.subr.mxu0 0.0
    %88 = vmatpush1.msra.mxu0 %v30
    %89 = vmatprep.subr.mxu0 0.0
    %90 = vmatpush1.msra.mxu0 %v31
    %91 = vmatprep.subr.mxu0 0.0
    %92 = vmatpush1.msra.mxu0 %v32
    %93 = vmatprep.subr.mxu0 0.0
    %94 = vmatpush1.msra.mxu0 %v33
    %95 = vmatprep.subr.mxu0 0.0
    %96 = vmatpush1.msra.mxu0 0.0
    %97 = vmatprep.subr.mxu0 0.0
    %98 = vmatpush1.msra.mxu0 0.0
    %99 = vmatprep.subr.mxu0 0.0
    %100 = vmatpush1.msra.mxu0 0.0
    %101 = vmatprep.subr.mxu0 0.0
    %102 = vmatpush1.msra.mxu0 0.0
    %103 = vmatprep.subr.mxu0 0.0
    %104 = vmatpush1.msra.mxu0 0.0
    %105 = vmatprep.subr.mxu0 0.0
    %106 = vmatpush1.msra.mxu0 0.0
    %107 = vmatprep.subr.mxu0 0.0
    %108 = vmatpush1.msra.mxu0 0.0
    %109 = vmatprep.subr.mxu0 0.0
    %110 = vmatpush1.msra.mxu0 0.0
    %111 = vmatprep.subr.mxu0 0.0
    %112 = vmatpush1.msra.mxu0 0.0
    %113 = vmatprep.subr.mxu0 0.0
    %114 = vmatpush1.msra.mxu0 0.0
    %115 = vmatprep.subr.mxu0 0.0
    %116 = vmatpush1.msra.mxu0 0.0
    %117 = vmatprep.subr.mxu0 0.0
    %118 = vmatpush1.msra.mxu0 0.0
    %119 = vmatprep.subr.mxu0 0.0
    %120 = vmatpush1.msra.mxu0 0.0
    %121 = vmatprep.subr.mxu0 0.0
    %122 = vmatpush1.msra.mxu0 0.0
    %123 = vmatprep.subr.mxu0 0.0
    %124 = vmatpush1.msra.mxu0 0.0
    %125 = vmatprep.subr.mxu0 0.0
    %126 = vmatpush1.msra.mxu0 0.0
    %127 = vmatprep.subr.mxu0 0.0
    %128 = vmatpush1.msra.mxu0 0.0
    %129 = vmatprep.subr.mxu0 0.0
    %130 = vmatpush1.msra.mxu0 0.0
    %131 = vmatprep.subr.mxu0 0.0
    %132 = vmatpush1.msra.mxu0 0.0
    %133 = vmatprep.subr.mxu0 0.0
    %134 = vmatpush1.msra.mxu0 0.0
    %135 = vmatprep.subr.mxu0 0.0
    %136 = vmatpush1.msra.mxu0 0.0
    %137 = vmatprep.subr.mxu0 0.0
    %138 = vmatpush1.msra.mxu0 0.0
    %139 = vmatprep.subr.mxu0 0.0
    %140 = vmatpush1.msra.mxu0 0.0
    %141 = vmatprep.subr.mxu0 0.0
    %142 = vmatpush1.msra.mxu0 0.0
    %143 = vmatprep.subr.mxu0 0.0
    %144 = vmatpush1.msra.mxu0 0.0
    %145 = vmatprep.subr.mxu0 0.0
    %146 = vmatpush1.msra.mxu0 0.0
    %147 = vmatprep.mubr.f32.mxu0 0.0
    %148 = vmatmul.mubr.f32.gmra.mrb[0].mxu0 %v36
    %v149 = vpop.f32.mrb[0].mxu0
    %v150 = vadd.f32 0.0, %v149
    %v151 = vpop.f32.mrb[0].mxu0
    %152 = vmatprep.mubr.f32.mxu0 0.0
    %153 = vmatmul.mubr.f32.gmra.mrb[0].mxu0 %v39
    %v154 = vpop.f32.mrb[0].mxu0
    %v155 = vadd.f32 0.0, %v154
    %v156 = vpop.f32.mrb[0].mxu0
    %157 = vmatprep.mubr.f32.mxu0 0.0
    %158 = vmatmul.mubr.f32.gmra.mrb[0].mxu0 %v42
    %v159 = vpop.f32.mrb[0].mxu0
    %v160 = vadd.f32 0.0, %v159
    %v161 = vpop.f32.mrb[0].mxu0
    %162 = vmatprep.mubr.f32.mxu0 0.0
    %163 = vmatmul.mubr.f32.gmra.mrb[0].mxu0 %v45
    %v164 = vpop.f32.mrb[0].mxu0
    %v165 = vadd.f32 0.0, %v164
    %v166 = vpop.f32.mrb[0].mxu0
    %167 = vmatprep.mubr.f32.mxu0 0.0
    %168 = vmatmul.mubr.f32.gmra.mrb[0].mxu0 %v48
    %v169 = vpop.f32.mrb[0].mxu0
    %v170 = vadd.f32 0.0, %v169
    %v171 = vpop.f32.mrb[0].mxu0
    %172 = vmatprep.mubr.f32.mxu0 0.0
    %173 = vmatmul.mubr.f32.gmra.mrb[0].mxu0 %v51
    %v174 = vpop.f32.mrb[0].mxu0
    %v175 = vadd.f32 0.0, %v174
    %v176 = vpop.f32.mrb[0].mxu0
    %177 = vmatprep.mubr.f32.mxu0 0.0
    %178 = vmatmul.mubr.f32.gmra.mrb[0].mxu0 %v54
    %v179 = vpop.f32.mrb[0].mxu0
    %v180 = vadd.f32 0.0, %v179
    %v181 = vpop.f32.mrb[0].mxu0
    %182 = vmatprep.mubr.f32.mxu0 0.0
    %183 = vmatmul.mubr.f32.gmra.mrb[0].mxu0 %v57
    %v184 = vpop.f32.mrb[0].mxu0
    %v185 = vadd.f32 0.0, %v184
    %v186 = vpop.f32.mrb[0].mxu0
    %187 = vmatprep.mubr.f32.mxu0 0.0
    %188 = vmatmul.mubr.f32.gmra.mrb[0].mxu0 %v60
    %v189 = vpop.f32.mrb[0].mxu0
    %v190 = vadd.f32 0.0, %v189
    %v191 = vpop.f32.mrb[0].mxu0
    %192 = vmatprep.mubr.f32.mxu0 0.0
    %193 = vmatmul.mubr.f32.gmra.mrb[0].mxu0 %v63
    %v194 = vpop.f32.mrb[0].mxu0
    %v195 = vadd.f32 0.0, %v194
    %v196 = vpop.f32.mrb[0].mxu0
    %197 = vmatprep.mubr.f32.mxu0 0.0
    %198 = vmatmul.mubr.f32.gmra.mrb[0].mxu0 %v66
    %v199 = vpop.f32.mrb[0].mxu0
    %v200 = vadd.f32 0.0, %v199
    %v201 = vpop.f32.mrb[0].mxu0
    %202 = vmatprep.mubr.f32.mxu0 0.0
    %203 = vmatmul.mubr.f32.gmra.mrb[0].mxu0 %v69
    %v204 = vpop.f32.mrb[0].mxu0
    %v205 = vadd.f32 0.0, %v204
    %v206 = vpop.f32.mrb[0].mxu0
    %207 = vmatprep.mubr.f32.mxu0 0.0
    %208 = vmatmul.mubr.f32.gmra.mrb[0].mxu0 %v72
    %v209 = vpop.f32.mrb[0].mxu0
    %v210 = vadd.f32 0.0, %v209
    %v211 = vpop.f32.mrb[0].mxu0
    %212 = vmatprep.mubr.f32.mxu0 0.0
    %213 = vmatmul.mubr.f32.gmra.mrb[0].mxu0 %v75
    %v214 = vpop.f32.mrb[0].mxu0
    %v215 = vadd.f32 0.0, %v214
    %v216 = vpop.f32.mrb[0].mxu0
    %217 = vmatprep.mubr.f32.mxu0 0.0
    %218 = vmatmul.mubr.f32.gmra.mrb[0].mxu0 %v78
    %v219 = vpop.f32.mrb[0].mxu0
    %v220 = vadd.f32 0.0, %v219
    %v221 = vpop.f32.mrb[0].mxu0
    %222 = vmatprep.mubr.f32.mxu0 0.0
    %223 = vmatmul.mubr.f32.gmra.mrb[0].mxu0 %v81
    %v224 = vpop.f32.mrb[0].mxu0
    %v225 = vadd.f32 0.0, %v224
    %v226 = vpop.f32.mrb[0].mxu0
    %227 = vdwg.mxu0
    %v228 = vld [vmem:[%s1 + $0x80] sm:$0x1]
    %v229 = vlaneseq
    %v230 = vshrl.u32 %v229, 7
    %v231 = vsub.s32 0, %v230
    %v232 = vrot.slane %v228, %v231
    %v233 = vadd.f32 %v150, %v232
    %v234 = vadd.f32 %v155, %v232
    %v235 = vadd.f32 %v160, %v232
    %v236 = vadd.f32 %v165, %v232
    %v237 = vadd.f32 %v170, %v232
    %v238 = vadd.f32 %v175, %v232
    %v239 = vadd.f32 %v180, %v232
    %v240 = vadd.f32 %v185, %v232
    %v241 = vadd.f32 %v190, %v232
    %v242 = vadd.f32 %v195, %v232
    %v243 = vadd.f32 %v200, %v232
    %v244 = vadd.f32 %v205, %v232
    %v245 = vadd.f32 %v210, %v232
    %v246 = vadd.f32 %v215, %v232
    %v247 = vadd.f32 %v220, %v232
    %v248 = vadd.f32 %v225, %v232
    %v249 = vmax.f32 %v233, 0.0
    %v250 = vmax.f32 %v234, 0.0
    %v251 = vmax.f32 %v235, 0.0
    %v252 = vmax.f32 %v236, 0.0
    %v253 = vmax.f32 %v237, 0.0
    %v254 = vmax.f32 %v238, 0.0
    %v255 = vmax.f32 %v239, 0.0
    %v256 = vmax.f32 %v240, 0.0
    %v257 = vmax.f32 %v241, 0.0
    %v258 = vmax.f32 %v242, 0.0
    %v259 = vmax.f32 %v243, 0.0
    %v260 = vmax.f32 %v244, 0.0
    %v261 = vmax.f32 %v245, 0.0
    %v262 = vmax.f32 %v246, 0.0
    %v263 = vmax.f32 %v247, 0.0
    %v264 = vmax.f32 %v248, 0.0
    %v265 = vld [vmem:[%s1 + $0x40] sm:$0xff]
    %v266 = vld [vmem:[%s1 + $0x48] sm:$0xff]
    %v267 = vld [vmem:[%s1 + $0x50] sm:$0xff]
    %v268 = vld [vmem:[%s1 + $0x58] sm:$0xff]
    %v269 = vld [vmem:[%s1 + $0x60] sm:$0xff]
    %v270 = vld [vmem:[%s1 + $0x68] sm:$0xff]
    %v271 = vld [vmem:[%s1 + $0x70] sm:$0xff]
    %v272 = vld [vmem:[%s1 + $0x78] sm:$0xff]
    %v273 = vld [vmem:[%s1 + $0x81] sm:$0x1]
    %v274 = vlaneseq
    %v275 = vshrl.u32 %v274, 7
    %v276 = vsub.s32 0, %v275
    %v277 = vrot.slane %v273, %v276
    %286 = vrot.lane.b32.xlu0 %v265, 64
    %v287 = vpop.permute.xlu0 %286
    %288 = vrot.lane.b32.xlu0 %v266, 64
    %v289 = vpop.permute.xlu0 %288
    %290 = vrot.lane.b32.xlu0 %v267, 64
    %v291 = vpop.permute.xlu0 %290
    %292 = vrot.lane.b32.xlu0 %v268, 64
    %v293 = vpop.permute.xlu0 %292
    %294 = vrot.lane.b32.xlu0 %v269, 64
    %v295 = vpop.permute.xlu0 %294
    %296 = vrot.lane.b32.xlu0 %v270, 64
    %v297 = vpop.permute.xlu0 %296
    %298 = vrot.lane.b32.xlu0 %v271, 64
    %v299 = vpop.permute.xlu0 %298
    %300 = vrot.lane.b32.xlu0 %v272, 64
    %v301 = vpop.permute.xlu0 %300
    %vm310 = vcmask 523264
    %v312 = vsel %vm310, %v249, 0
    %v315 = vsel %vm310, %v250, 0
    %v318 = vsel %vm310, %v251, 0
    %v321 = vsel %vm310, %v252, 0
    %v324 = vsel %vm310, %v253, 0
    %v327 = vsel %vm310, %v254, 0
    %v330 = vsel %vm310, %v255, 0
    %v333 = vsel %vm310, %v256, 0
    %v336 = vsel %vm310, %v257, 0
    %v339 = vsel %vm310, %v258, 0
    %v342 = vsel %vm310, %v259, 0
    %v345 = vsel %vm310, %v260, 0
    %v348 = vsel %vm310, %v261, 0
    %v351 = vsel %vm310, %v262, 0
    %v354 = vsel %vm310, %v263, 0
    %v357 = vsel %vm310, %v264, 0
    %359 = vmatprep.subr.mxu0 0.0
    %360 = vmatpush1.msra.mxu0 %v287
    %361 = vmatprep.subr.mxu0 0.0
    %362 = vmatpush1.msra.mxu0 %v289
    %363 = vmatprep.subr.mxu0 0.0
    %364 = vmatpush1.msra.mxu0 %v291
    %365 = vmatprep.subr.mxu0 0.0
    %366 = vmatpush1.msra.mxu0 %v293
    %367 = vmatprep.subr.mxu0 0.0
    %368 = vmatpush1.msra.mxu0 %v295
    %369 = vmatprep.subr.mxu0 0.0
    %370 = vmatpush1.msra.mxu0 %v297
    %371 = vmatprep.subr.mxu0 0.0
    %372 = vmatpush1.msra.mxu0 %v299
    %373 = vmatprep.subr.mxu0 0.0
    %374 = vmatpush1.msra.mxu0 %v301
    %375 = vmatprep.subr.mxu0 0.0
    %376 = vmatpush1.msra.mxu0 0.0
    %377 = vmatprep.subr.mxu0 0.0
    %378 = vmatpush1.msra.mxu0 0.0
    %379 = vmatprep.subr.mxu0 0.0
    %380 = vmatpush1.msra.mxu0 0.0
    %381 = vmatprep.subr.mxu0 0.0
    %382 = vmatpush1.msra.mxu0 0.0
    %383 = vmatprep.subr.mxu0 0.0
    %384 = vmatpush1.msra.mxu0 0.0
    %385 = vmatprep.subr.mxu0 0.0
    %386 = vmatpush1.msra.mxu0 0.0
    %387 = vmatprep.subr.mxu0 0.0
    %388 = vmatpush1.msra.mxu0 0.0
    %389 = vmatprep.subr.mxu0 0.0
    %390 = vmatpush1.msra.mxu0 0.0
    %391 = vmatprep.subr.mxu0 0.0
    %392 = vmatpush1.msra.mxu0 0.0
    %393 = vmatprep.subr.mxu0 0.0
    %394 = vmatpush1.msra.mxu0 0.0
    %395 = vmatprep.subr.mxu0 0.0
    %396 = vmatpush1.msra.mxu0 0.0
    %397 = vmatprep.subr.mxu0 0.0
    %398 = vmatpush1.msra.mxu0 0.0
    %399 = vmatprep.subr.mxu0 0.0
    %400 = vmatpush1.msra.mxu0 0.0
    %401 = vmatprep.subr.mxu0 0.0
    %402 = vmatpush1.msra.mxu0 0.0
    %403 = vmatprep.subr.mxu0 0.0
    %404 = vmatpush1.msra.mxu0 0.0
    %405 = vmatprep.subr.mxu0 0.0
    %406 = vmatpush1.msra.mxu0 0.0
    %407 = vmatprep.subr.mxu0 0.0
    %408 = vmatpush1.msra.mxu0 0.0
    %409 = vmatprep.subr.mxu0 0.0
    %410 = vmatpush1.msra.mxu0 0.0
    %411 = vmatprep.subr.mxu0 0.0
    %412 = vmatpush1.msra.mxu0 0.0
    %413 = vmatprep.subr.mxu0 0.0
    %414 = vmatpush1.msra.mxu0 0.0
    %415 = vmatprep.subr.mxu0 0.0
    %416 = vmatpush1.msra.mxu0 0.0
    %417 = vmatprep.subr.mxu0 0.0
    %418 = vmatpush1.msra.mxu0 0.0
    %419 = vmatprep.subr.mxu0 0.0
    %420 = vmatpush1.msra.mxu0 0.0
    %421 = vmatprep.subr.mxu0 0.0
    %422 = vmatpush1.msra.mxu0 0.0
    %423 = vmatprep.mubr.f32.mxu0 0.0
    %424 = vmatmul.mubr.f32.gmra.mrb[0].mxu0 %v312
    %v425 = vpop.f32.mrb[0].mxu0
    %v426 = vadd.f32 %v277, %v425
    %v427 = vpop.f32.mrb[0].mxu0
    %428 = vmatprep.mubr.f32.mxu0 0.0
    %429 = vmatmul.mubr.f32.gmra.mrb[0].mxu0 %v315
    %v430 = vpop.f32.mrb[0].mxu0
    %v431 = vadd.f32 %v277, %v430
    %v432 = vpop.f32.mrb[0].mxu0
    %433 = vmatprep.mubr.f32.mxu0 0.0
    %434 = vmatmul.mubr.f32.gmra.mrb[0].mxu0 %v318
    %v435 = vpop.f32.mrb[0].mxu0
    %v436 = vadd.f32 %v277, %v435
    %v437 = vpop.f32.mrb[0].mxu0
    %438 = vmatprep.mubr.f32.mxu0 0.0
    %439 = vmatmul.mubr.f32.gmra.mrb[0].mxu0 %v321
    %v440 = vpop.f32.mrb[0].mxu0
    %v441 = vadd.f32 %v277, %v440
    %v442 = vpop.f32.mrb[0].mxu0
    %443 = vmatprep.mubr.f32.mxu0 0.0
    %444 = vmatmul.mubr.f32.gmra.mrb[0].mxu0 %v324
    %v445 = vpop.f32.mrb[0].mxu0
    %v446 = vadd.f32 %v277, %v445
    %v447 = vpop.f32.mrb[0].mxu0
    %448 = vmatprep.mubr.f32.mxu0 0.0
    %449 = vmatmul.mubr.f32.gmra.mrb[0].mxu0 %v327
    %v450 = vpop.f32.mrb[0].mxu0
    %v451 = vadd.f32 %v277, %v450
    %v452 = vpop.f32.mrb[0].mxu0
    %453 = vmatprep.mubr.f32.mxu0 0.0
    %454 = vmatmul.mubr.f32.gmra.mrb[0].mxu0 %v330
    %v455 = vpop.f32.mrb[0].mxu0
    %v456 = vadd.f32 %v277, %v455
    %v457 = vpop.f32.mrb[0].mxu0
    %458 = vmatprep.mubr.f32.mxu0 0.0
    %459 = vmatmul.mubr.f32.gmra.mrb[0].mxu0 %v333
    %v460 = vpop.f32.mrb[0].mxu0
    %v461 = vadd.f32 %v277, %v460
    %v462 = vpop.f32.mrb[0].mxu0
    %463 = vmatprep.mubr.f32.mxu0 0.0
    %464 = vmatmul.mubr.f32.gmra.mrb[0].mxu0 %v336
    %v465 = vpop.f32.mrb[0].mxu0
    %v466 = vadd.f32 %v277, %v465
    %v467 = vpop.f32.mrb[0].mxu0
    %468 = vmatprep.mubr.f32.mxu0 0.0
    %469 = vmatmul.mubr.f32.gmra.mrb[0].mxu0 %v339
    %v470 = vpop.f32.mrb[0].mxu0
    %v471 = vadd.f32 %v277, %v470
    %v472 = vpop.f32.mrb[0].mxu0
    %473 = vmatprep.mubr.f32.mxu0 0.0
    %474 = vmatmul.mubr.f32.gmra.mrb[0].mxu0 %v342
    %v475 = vpop.f32.mrb[0].mxu0
    %v476 = vadd.f32 %v277, %v475
    %v477 = vpop.f32.mrb[0].mxu0
    %478 = vmatprep.mubr.f32.mxu0 0.0
    %479 = vmatmul.mubr.f32.gmra.mrb[0].mxu0 %v345
    %v480 = vpop.f32.mrb[0].mxu0
    %v481 = vadd.f32 %v277, %v480
    %v482 = vpop.f32.mrb[0].mxu0
    %483 = vmatprep.mubr.f32.mxu0 0.0
    %484 = vmatmul.mubr.f32.gmra.mrb[0].mxu0 %v348
    %v485 = vpop.f32.mrb[0].mxu0
    %v486 = vadd.f32 %v277, %v485
    %v487 = vpop.f32.mrb[0].mxu0
    %488 = vmatprep.mubr.f32.mxu0 0.0
    %489 = vmatmul.mubr.f32.gmra.mrb[0].mxu0 %v351
    %v490 = vpop.f32.mrb[0].mxu0
    %v491 = vadd.f32 %v277, %v490
    %v492 = vpop.f32.mrb[0].mxu0
    %493 = vmatprep.mubr.f32.mxu0 0.0
    %494 = vmatmul.mubr.f32.gmra.mrb[0].mxu0 %v354
    %v495 = vpop.f32.mrb[0].mxu0
    %v496 = vadd.f32 %v277, %v495
    %v497 = vpop.f32.mrb[0].mxu0
    %498 = vmatprep.mubr.f32.mxu0 0.0
    %499 = vmatmul.mubr.f32.gmra.mrb[0].mxu0 %v357
    %v500 = vpop.f32.mrb[0].mxu0
    %v501 = vadd.f32 %v277, %v500
    %v502 = vpop.f32.mrb[0].mxu0
    %503 = vdwg.mxu0
    %v504 = vmax.f32 %v426, 0.0
    %v505 = vmax.f32 %v431, 0.0
    %v506 = vmax.f32 %v436, 0.0
    %v507 = vmax.f32 %v441, 0.0
    %v508 = vmax.f32 %v446, 0.0
    %v509 = vmax.f32 %v451, 0.0
    %v510 = vmax.f32 %v456, 0.0
    %v511 = vmax.f32 %v461, 0.0
    %v512 = vmax.f32 %v466, 0.0
    %v513 = vmax.f32 %v471, 0.0
    %v514 = vmax.f32 %v476, 0.0
    %v515 = vmax.f32 %v481, 0.0
    %v516 = vmax.f32 %v486, 0.0
    %v517 = vmax.f32 %v491, 0.0
    %v518 = vmax.f32 %v496, 0.0
    %v519 = vmax.f32 %v501, 0.0
    %v520 = vld [vmem:[%s1 + $0x30] sm:$0xff]
    %v521 = vld [vmem:[%s1 + $0x38] sm:$0xff]
    %v522 = vld [vmem:[%s1 + $0x82] sm:$0x1]
    %vm523 = vcmask 130048
    %v525 = vsel %vm523, %v504, 0
    %v528 = vsel %vm523, %v505, 0
    %v531 = vsel %vm523, %v506, 0
    %v534 = vsel %vm523, %v507, 0
    %v537 = vsel %vm523, %v508, 0
    %v540 = vsel %vm523, %v509, 0
    %v543 = vsel %vm523, %v510, 0
    %v546 = vsel %vm523, %v511, 0
    %v549 = vsel %vm523, %v512, 0
    %v552 = vsel %vm523, %v513, 0
    %v555 = vsel %vm523, %v514, 0
    %v558 = vsel %vm523, %v515, 0
    %v561 = vsel %vm523, %v516, 0
    %v564 = vsel %vm523, %v517, 0
    %v567 = vsel %vm523, %v518, 0
    %v570 = vsel %vm523, %v519, 0
    %572 = vmatprep.subr.mxu0 0.0
    %573 = vmatpush1.msra.mxu0 %v520
    %574 = vmatprep.subr.mxu0 0.0
    %575 = vmatpush1.msra.mxu0 %v521
    %576 = vmatprep.subr.mxu0 0.0
    %577 = vmatpush1.msra.mxu0 0.0
    %578 = vmatprep.subr.mxu0 0.0
    %579 = vmatpush1.msra.mxu0 0.0
    %580 = vmatprep.subr.mxu0 0.0
    %581 = vmatpush1.msra.mxu0 0.0
    %582 = vmatprep.subr.mxu0 0.0
    %583 = vmatpush1.msra.mxu0 0.0
    %584 = vmatprep.subr.mxu0 0.0
    %585 = vmatpush1.msra.mxu0 0.0
    %586 = vmatprep.subr.mxu0 0.0
    %587 = vmatpush1.msra.mxu0 0.0
    %588 = vmatprep.subr.mxu0 0.0
    %589 = vmatpush1.msra.mxu0 0.0
    %590 = vmatprep.subr.mxu0 0.0
    %591 = vmatpush1.msra.mxu0 0.0
    %592 = vmatprep.subr.mxu0 0.0
    %593 = vmatpush1.msra.mxu0 0.0
    %594 = vmatprep.subr.mxu0 0.0
    %595 = vmatpush1.msra.mxu0 0.0
    %596 = vmatprep.subr.mxu0 0.0
    %597 = vmatpush1.msra.mxu0 0.0
    %598 = vmatprep.subr.mxu0 0.0
    %599 = vmatpush1.msra.mxu0 0.0
    %600 = vmatprep.subr.mxu0 0.0
    %601 = vmatpush1.msra.mxu0 0.0
    %602 = vmatprep.subr.mxu0 0.0
    %603 = vmatpush1.msra.mxu0 0.0
    %604 = vmatprep.subr.mxu0 0.0
    %605 = vmatpush1.msra.mxu0 0.0
    %606 = vmatprep.subr.mxu0 0.0
    %607 = vmatpush1.msra.mxu0 0.0
    %608 = vmatprep.subr.mxu0 0.0
    %609 = vmatpush1.msra.mxu0 0.0
    %610 = vmatprep.subr.mxu0 0.0
    %611 = vmatpush1.msra.mxu0 0.0
    %612 = vmatprep.subr.mxu0 0.0
    %613 = vmatpush1.msra.mxu0 0.0
    %614 = vmatprep.subr.mxu0 0.0
    %615 = vmatpush1.msra.mxu0 0.0
    %616 = vmatprep.subr.mxu0 0.0
    %617 = vmatpush1.msra.mxu0 0.0
    %618 = vmatprep.subr.mxu0 0.0
    %619 = vmatpush1.msra.mxu0 0.0
    %620 = vmatprep.subr.mxu0 0.0
    %621 = vmatpush1.msra.mxu0 0.0
    %622 = vmatprep.subr.mxu0 0.0
    %623 = vmatpush1.msra.mxu0 0.0
    %624 = vmatprep.subr.mxu0 0.0
    %625 = vmatpush1.msra.mxu0 0.0
    %626 = vmatprep.subr.mxu0 0.0
    %627 = vmatpush1.msra.mxu0 0.0
    %628 = vmatprep.subr.mxu0 0.0
    %629 = vmatpush1.msra.mxu0 0.0
    %630 = vmatprep.subr.mxu0 0.0
    %631 = vmatpush1.msra.mxu0 0.0
    %632 = vmatprep.subr.mxu0 0.0
    %633 = vmatpush1.msra.mxu0 0.0
    %634 = vmatprep.subr.mxu0 0.0
    %635 = vmatpush1.msra.mxu0 0.0
    %636 = vmatprep.mubr.f32.mxu0 0.0
    %637 = vmatmul.mubr.f32.gmra.mrb[0].mxu0 %v525
    %v638 = vpop.f32.mrb[0].mxu0
    %v639 = vadd.f32 0.0, %v638
    %v640 = vpop.f32.mrb[0].mxu0
    %641 = vmatprep.mubr.f32.mxu0 0.0
    %642 = vmatmul.mubr.f32.gmra.mrb[0].mxu0 %v528
    %v643 = vpop.f32.mrb[0].mxu0
    %v644 = vadd.f32 0.0, %v643
    %v645 = vpop.f32.mrb[0].mxu0
    %646 = vmatprep.mubr.f32.mxu0 0.0
    %647 = vmatmul.mubr.f32.gmra.mrb[0].mxu0 %v531
    %v648 = vpop.f32.mrb[0].mxu0
    %v649 = vadd.f32 0.0, %v648
    %v650 = vpop.f32.mrb[0].mxu0
    %651 = vmatprep.mubr.f32.mxu0 0.0
    %652 = vmatmul.mubr.f32.gmra.mrb[0].mxu0 %v534
    %v653 = vpop.f32.mrb[0].mxu0
    %v654 = vadd.f32 0.0, %v653
    %v655 = vpop.f32.mrb[0].mxu0
    %656 = vmatprep.mubr.f32.mxu0 0.0
    %657 = vmatmul.mubr.f32.gmra.mrb[0].mxu0 %v537
    %v658 = vpop.f32.mrb[0].mxu0
    %v659 = vadd.f32 0.0, %v658
    %v660 = vpop.f32.mrb[0].mxu0
    %661 = vmatprep.mubr.f32.mxu0 0.0
    %662 = vmatmul.mubr.f32.gmra.mrb[0].mxu0 %v540
    %v663 = vpop.f32.mrb[0].mxu0
    %v664 = vadd.f32 0.0, %v663
    %v665 = vpop.f32.mrb[0].mxu0
    %666 = vmatprep.mubr.f32.mxu0 0.0
    %667 = vmatmul.mubr.f32.gmra.mrb[0].mxu0 %v543
    %v668 = vpop.f32.mrb[0].mxu0
    %v669 = vadd.f32 0.0, %v668
    %v670 = vpop.f32.mrb[0].mxu0
    %671 = vmatprep.mubr.f32.mxu0 0.0
    %672 = vmatmul.mubr.f32.gmra.mrb[0].mxu0 %v546
    %v673 = vpop.f32.mrb[0].mxu0
    %v674 = vadd.f32 0.0, %v673
    %v675 = vpop.f32.mrb[0].mxu0
    %676 = vmatprep.mubr.f32.mxu0 0.0
    %677 = vmatmul.mubr.f32.gmra.mrb[0].mxu0 %v549
    %v678 = vpop.f32.mrb[0].mxu0
    %v679 = vadd.f32 0.0, %v678
    %v680 = vpop.f32.mrb[0].mxu0
    %681 = vmatprep.mubr.f32.mxu0 0.0
    %682 = vmatmul.mubr.f32.gmra.mrb[0].mxu0 %v552
    %v683 = vpop.f32.mrb[0].mxu0
    %v684 = vadd.f32 0.0, %v683
    %v685 = vpop.f32.mrb[0].mxu0
    %686 = vmatprep.mubr.f32.mxu0 0.0
    %687 = vmatmul.mubr.f32.gmra.mrb[0].mxu0 %v555
    %v688 = vpop.f32.mrb[0].mxu0
    %v689 = vadd.f32 0.0, %v688
    %v690 = vpop.f32.mrb[0].mxu0
    %691 = vmatprep.mubr.f32.mxu0 0.0
    %692 = vmatmul.mubr.f32.gmra.mrb[0].mxu0 %v558
    %v693 = vpop.f32.mrb[0].mxu0
    %v694 = vadd.f32 0.0, %v693
    %v695 = vpop.f32.mrb[0].mxu0
    %696 = vmatprep.mubr.f32.mxu0 0.0
    %697 = vmatmul.mubr.f32.gmra.mrb[0].mxu0 %v561
    %v698 = vpop.f32.mrb[0].mxu0
    %v699 = vadd.f32 0.0, %v698
    %v700 = vpop.f32.mrb[0].mxu0
    %701 = vmatprep.mubr.f32.mxu0 0.0
    %702 = vmatmul.mubr.f32.gmra.mrb[0].mxu0 %v564
    %v703 = vpop.f32.mrb[0].mxu0
    %v704 = vadd.f32 0.0, %v703
    %v705 = vpop.f32.mrb[0].mxu0
    %706 = vmatprep.mubr.f32.mxu0 0.0
    %707 = vmatmul.mubr.f32.gmra.mrb[0].mxu0 %v567
    %v708 = vpop.f32.mrb[0].mxu0
    %v709 = vadd.f32 0.0, %v708
    %v710 = vpop.f32.mrb[0].mxu0
    %711 = vmatprep.mubr.f32.mxu0 0.0
    %712 = vmatmul.mubr.f32.gmra.mrb[0].mxu0 %v570
    %v713 = vpop.f32.mrb[0].mxu0
    %v714 = vadd.f32 0.0, %v713
    %v715 = vpop.f32.mrb[0].mxu0
    %716 = vdwg.mxu0
    %733 = vrot.lane.b32.xlu0 %v639, 64
    %v734 = vpop.permute.xlu0 %733
    %735 = vrot.lane.b32.xlu0 %v644, 64
    %v736 = vpop.permute.xlu0 %735
    %737 = vrot.lane.b32.xlu0 %v649, 64
    %v738 = vpop.permute.xlu0 %737
    %739 = vrot.lane.b32.xlu0 %v654, 64
    %v740 = vpop.permute.xlu0 %739
    %741 = vrot.lane.b32.xlu0 %v659, 64
    %v742 = vpop.permute.xlu0 %741
    %743 = vrot.lane.b32.xlu0 %v664, 64
    %v744 = vpop.permute.xlu0 %743
    %745 = vrot.lane.b32.xlu0 %v669, 64
    %v746 = vpop.permute.xlu0 %745
    %747 = vrot.lane.b32.xlu0 %v674, 64
    %v748 = vpop.permute.xlu0 %747
    %749 = vrot.lane.b32.xlu0 %v679, 64
    %v750 = vpop.permute.xlu0 %749
    %751 = vrot.lane.b32.xlu0 %v684, 64
    %v752 = vpop.permute.xlu0 %751
    %753 = vrot.lane.b32.xlu0 %v689, 64
    %v754 = vpop.permute.xlu0 %753
    %755 = vrot.lane.b32.xlu0 %v694, 64
    %v756 = vpop.permute.xlu0 %755
    %757 = vrot.lane.b32.xlu0 %v699, 64
    %v758 = vpop.permute.xlu0 %757
    %759 = vrot.lane.b32.xlu0 %v704, 64
    %v760 = vpop.permute.xlu0 %759
    %761 = vrot.lane.b32.xlu0 %v709, 64
    %v762 = vpop.permute.xlu0 %761
    %763 = vrot.lane.b32.xlu0 %v714, 64
    %v764 = vpop.permute.xlu0 %763
    %v781 = vadd.f32 %v150, %v734
    %v782 = vadd.f32 %v155, %v736
    %v783 = vadd.f32 %v160, %v738
    %v784 = vadd.f32 %v165, %v740
    %v785 = vadd.f32 %v170, %v742
    %v786 = vadd.f32 %v175, %v744
    %v787 = vadd.f32 %v180, %v746
    %v788 = vadd.f32 %v185, %v748
    %v789 = vadd.f32 %v190, %v750
    %v790 = vadd.f32 %v195, %v752
    %v791 = vadd.f32 %v200, %v754
    %v792 = vadd.f32 %v205, %v756
    %v793 = vadd.f32 %v210, %v758
    %v794 = vadd.f32 %v215, %v760
    %v795 = vadd.f32 %v220, %v762
    %v796 = vadd.f32 %v225, %v764
    %v797 = vlaneseq
    %v798 = vshrl.u32 %v797, 7
    %v799 = vsub.s32 0, %v798
    %v800 = vrot.slane %v522, %v799
    %802 = vrot.lane.b32.xlu0 %v800, 64
    %v803 = vpop.permute.xlu0 %802
    %v805 = vadd.f32 %v781, %v803
    %v806 = vadd.f32 %v782, %v803
    %v807 = vadd.f32 %v783, %v803
    %v808 = vadd.f32 %v784, %v803
    %v809 = vadd.f32 %v785, %v803
    %v810 = vadd.f32 %v786, %v803
    %v811 = vadd.f32 %v787, %v803
    %v812 = vadd.f32 %v788, %v803
    %v813 = vadd.f32 %v789, %v803
    %v814 = vadd.f32 %v790, %v803
    %v815 = vadd.f32 %v791, %v803
    %v816 = vadd.f32 %v792, %v803
    %v817 = vadd.f32 %v793, %v803
    %v818 = vadd.f32 %v794, %v803
    %v819 = vadd.f32 %v795, %v803
    %v820 = vadd.f32 %v796, %v803
    %v821 = vlaneseq
    %v822 = vand.u32 %v821, 127
    %vm823 = vcmp.lt.s32.totalorder %v822, 32
    %v824 = vsel %vm823, 1, 0
    %vm825 = vcmp.eq.s32.totalorder %v824, 1
    %842 = vrot.lane.b32.xlu0 %v805, 64
    %v843 = vpop.permute.xlu0 %842
    %844 = vrot.lane.b32.xlu0 %v806, 64
    %v845 = vpop.permute.xlu0 %844
    %846 = vrot.lane.b32.xlu0 %v807, 64
    %v847 = vpop.permute.xlu0 %846
    %848 = vrot.lane.b32.xlu0 %v808, 64
    %v849 = vpop.permute.xlu0 %848
    %850 = vrot.lane.b32.xlu0 %v809, 64
    %v851 = vpop.permute.xlu0 %850
    %852 = vrot.lane.b32.xlu0 %v810, 64
    %v853 = vpop.permute.xlu0 %852
    %854 = vrot.lane.b32.xlu0 %v811, 64
    %v855 = vpop.permute.xlu0 %854
    %856 = vrot.lane.b32.xlu0 %v812, 64
    %v857 = vpop.permute.xlu0 %856
    %858 = vrot.lane.b32.xlu0 %v813, 64
    %v859 = vpop.permute.xlu0 %858
    %860 = vrot.lane.b32.xlu0 %v814, 64
    %v861 = vpop.permute.xlu0 %860
    %862 = vrot.lane.b32.xlu0 %v815, 64
    %v863 = vpop.permute.xlu0 %862
    %864 = vrot.lane.b32.xlu0 %v816, 64
    %v865 = vpop.permute.xlu0 %864
    %866 = vrot.lane.b32.xlu0 %v817, 64
    %v867 = vpop.permute.xlu0 %866
    %868 = vrot.lane.b32.xlu0 %v818, 64
    %v869 = vpop.permute.xlu0 %868
    %870 = vrot.lane.b32.xlu0 %v819, 64
    %v871 = vpop.permute.xlu0 %870
    %872 = vrot.lane.b32.xlu0 %v820, 64
    %v873 = vpop.permute.xlu0 %872
    %v890 = vsel %vm825, %v843, 0.0
    %v891 = vsel %vm825, %v845, 0.0
    %v892 = vsel %vm825, %v847, 0.0
    %v893 = vsel %vm825, %v849, 0.0
    %v894 = vsel %vm825, %v851, 0.0
    %v895 = vsel %vm825, %v853, 0.0
    %v896 = vsel %vm825, %v855, 0.0
    %v897 = vsel %vm825, %v857, 0.0
    %v898 = vsel %vm825, %v859, 0.0
    %v899 = vsel %vm825, %v861, 0.0
    %v900 = vsel %vm825, %v863, 0.0
    %v901 = vsel %vm825, %v865, 0.0
    %v902 = vsel %vm825, %v867, 0.0
    %v903 = vsel %vm825, %v869, 0.0
    %v904 = vsel %vm825, %v871, 0.0
    %v905 = vsel %vm825, %v873, 0.0
    %922 = vrot.lane.b32.xlu0 %v890, 64
    %v923 = vpop.permute.xlu0 %922
    %924 = vrot.lane.b32.xlu0 %v891, 64
    %v925 = vpop.permute.xlu0 %924
    %926 = vrot.lane.b32.xlu0 %v892, 64
    %v927 = vpop.permute.xlu0 %926
    %928 = vrot.lane.b32.xlu0 %v893, 64
    %v929 = vpop.permute.xlu0 %928
    %930 = vrot.lane.b32.xlu0 %v894, 64
    %v931 = vpop.permute.xlu0 %930
    %932 = vrot.lane.b32.xlu0 %v895, 64
    %v933 = vpop.permute.xlu0 %932
    %934 = vrot.lane.b32.xlu0 %v896, 64
    %v935 = vpop.permute.xlu0 %934
    %936 = vrot.lane.b32.xlu0 %v897, 64
    %v937 = vpop.permute.xlu0 %936
    %938 = vrot.lane.b32.xlu0 %v898, 64
    %v939 = vpop.permute.xlu0 %938
    %940 = vrot.lane.b32.xlu0 %v899, 64
    %v941 = vpop.permute.xlu0 %940
    %942 = vrot.lane.b32.xlu0 %v900, 64
    %v943 = vpop.permute.xlu0 %942
    %944 = vrot.lane.b32.xlu0 %v901, 64
    %v945 = vpop.permute.xlu0 %944
    %946 = vrot.lane.b32.xlu0 %v902, 64
    %v947 = vpop.permute.xlu0 %946
    %948 = vrot.lane.b32.xlu0 %v903, 64
    %v949 = vpop.permute.xlu0 %948
    %950 = vrot.lane.b32.xlu0 %v904, 64
    %v951 = vpop.permute.xlu0 %950
    %952 = vrot.lane.b32.xlu0 %v905, 64
    %v953 = vpop.permute.xlu0 %952
    %v970 = vsub.f32 %v805, %v923
    %v971 = vsub.f32 %v806, %v925
    %v972 = vsub.f32 %v807, %v927
    %v973 = vsub.f32 %v808, %v929
    %v974 = vsub.f32 %v809, %v931
    %v975 = vsub.f32 %v810, %v933
    %v976 = vsub.f32 %v811, %v935
    %v977 = vsub.f32 %v812, %v937
    %v978 = vsub.f32 %v813, %v939
    %v979 = vsub.f32 %v814, %v941
    %v980 = vsub.f32 %v815, %v943
    %v981 = vsub.f32 %v816, %v945
    %v982 = vsub.f32 %v817, %v947
    %v983 = vsub.f32 %v818, %v949
    %v984 = vsub.f32 %v819, %v951
    %v985 = vsub.f32 %v820, %v953
    %v986 = vsel %vm310, %v890, 0.0
    %987 = vadd.xlane.f32.xlu0 %v986
    %v988 = vpop.xlane.xlu0 %987
    %v989 = vsel %vm310, %v891, 0.0
    %990 = vadd.xlane.f32.xlu0 %v989
    %v991 = vpop.xlane.xlu0 %990
    %v992 = vsel %vm310, %v892, 0.0
    %993 = vadd.xlane.f32.xlu0 %v992
    %v994 = vpop.xlane.xlu0 %993
    %v995 = vsel %vm310, %v893, 0.0
    %996 = vadd.xlane.f32.xlu0 %v995
    %v997 = vpop.xlane.xlu0 %996
    %v998 = vsel %vm310, %v894, 0.0
    %999 = vadd.xlane.f32.xlu0 %v998
    %v1000 = vpop.xlane.xlu0 %999
    %v1001 = vsel %vm310, %v895, 0.0
    %1002 = vadd.xlane.f32.xlu0 %v1001
    %v1003 = vpop.xlane.xlu0 %1002
    %v1004 = vsel %vm310, %v896, 0.0
    %1005 = vadd.xlane.f32.xlu0 %v1004
    %v1006 = vpop.xlane.xlu0 %1005
    %v1007 = vsel %vm310, %v897, 0.0
    %1008 = vadd.xlane.f32.xlu0 %v1007
    %v1009 = vpop.xlane.xlu0 %1008
    %v1010 = vsel %vm310, %v898, 0.0
    %1011 = vadd.xlane.f32.xlu0 %v1010
    %v1012 = vpop.xlane.xlu0 %1011
    %v1013 = vsel %vm310, %v899, 0.0
    %1014 = vadd.xlane.f32.xlu0 %v1013
    %v1015 = vpop.xlane.xlu0 %1014
    %v1016 = vsel %vm310, %v900, 0.0
    %1017 = vadd.xlane.f32.xlu0 %v1016
    %v1018 = vpop.xlane.xlu0 %1017
    %v1019 = vsel %vm310, %v901, 0.0
    %1020 = vadd.xlane.f32.xlu0 %v1019
    %v1021 = vpop.xlane.xlu0 %1020
    %v1022 = vsel %vm310, %v902, 0.0
    %1023 = vadd.xlane.f32.xlu0 %v1022
    %v1024 = vpop.xlane.xlu0 %1023
    %v1025 = vsel %vm310, %v903, 0.0
    %1026 = vadd.xlane.f32.xlu0 %v1025
    %v1027 = vpop.xlane.xlu0 %1026
    %v1028 = vsel %vm310, %v904, 0.0
    %1029 = vadd.xlane.f32.xlu0 %v1028
    %v1030 = vpop.xlane.xlu0 %1029
    %v1031 = vsel %vm310, %v905, 0.0
    %1032 = vadd.xlane.f32.xlu0 %v1031
    %v1033 = vpop.xlane.xlu0 %1032
    %1050 = vrot.lane.b32.xlu0 %v970, 64
    %v1051 = vpop.permute.xlu0 %1050
    %1052 = vrot.lane.b32.xlu0 %v971, 64
    %v1053 = vpop.permute.xlu0 %1052
    %1054 = vrot.lane.b32.xlu0 %v972, 64
    %v1055 = vpop.permute.xlu0 %1054
    %1056 = vrot.lane.b32.xlu0 %v973, 64
    %v1057 = vpop.permute.xlu0 %1056
    %1058 = vrot.lane.b32.xlu0 %v974, 64
    %v1059 = vpop.permute.xlu0 %1058
    %1060 = vrot.lane.b32.xlu0 %v975, 64
    %v1061 = vpop.permute.xlu0 %1060
    %1062 = vrot.lane.b32.xlu0 %v976, 64
    %v1063 = vpop.permute.xlu0 %1062
    %1064 = vrot.lane.b32.xlu0 %v977, 64
    %v1065 = vpop.permute.xlu0 %1064
    %1066 = vrot.lane.b32.xlu0 %v978, 64
    %v1067 = vpop.permute.xlu0 %1066
    %1068 = vrot.lane.b32.xlu0 %v979, 64
    %v1069 = vpop.permute.xlu0 %1068
    %1070 = vrot.lane.b32.xlu0 %v980, 64
    %v1071 = vpop.permute.xlu0 %1070
    %1072 = vrot.lane.b32.xlu0 %v981, 64
    %v1073 = vpop.permute.xlu0 %1072
    %1074 = vrot.lane.b32.xlu0 %v982, 64
    %v1075 = vpop.permute.xlu0 %1074
    %1076 = vrot.lane.b32.xlu0 %v983, 64
    %v1077 = vpop.permute.xlu0 %1076
    %1078 = vrot.lane.b32.xlu0 %v984, 64
    %v1079 = vpop.permute.xlu0 %1078
    %1080 = vrot.lane.b32.xlu0 %v985, 64
    %v1081 = vpop.permute.xlu0 %1080
    %v1098 = vsel %vm310, %v1051, 0.0
    %1099 = vadd.xlane.f32.xlu0 %v1098
    %v1100 = vpop.xlane.xlu0 %1099
    %v1101 = vsel %vm310, %v1053, 0.0
    %1102 = vadd.xlane.f32.xlu0 %v1101
    %v1103 = vpop.xlane.xlu0 %1102
    %v1104 = vsel %vm310, %v1055, 0.0
    %1105 = vadd.xlane.f32.xlu0 %v1104
    %v1106 = vpop.xlane.xlu0 %1105
    %v1107 = vsel %vm310, %v1057, 0.0
    %1108 = vadd.xlane.f32.xlu0 %v1107
    %v1109 = vpop.xlane.xlu0 %1108
    %v1110 = vsel %vm310, %v1059, 0.0
    %1111 = vadd.xlane.f32.xlu0 %v1110
    %v1112 = vpop.xlane.xlu0 %1111
    %v1113 = vsel %vm310, %v1061, 0.0
    %1114 = vadd.xlane.f32.xlu0 %v1113
    %v1115 = vpop.xlane.xlu0 %1114
    %v1116 = vsel %vm310, %v1063, 0.0
    %1117 = vadd.xlane.f32.xlu0 %v1116
    %v1118 = vpop.xlane.xlu0 %1117
    %v1119 = vsel %vm310, %v1065, 0.0
    %1120 = vadd.xlane.f32.xlu0 %v1119
    %v1121 = vpop.xlane.xlu0 %1120
    %v1122 = vsel %vm310, %v1067, 0.0
    %1123 = vadd.xlane.f32.xlu0 %v1122
    %v1124 = vpop.xlane.xlu0 %1123
    %v1125 = vsel %vm310, %v1069, 0.0
    %1126 = vadd.xlane.f32.xlu0 %v1125
    %v1127 = vpop.xlane.xlu0 %1126
    %v1128 = vsel %vm310, %v1071, 0.0
    %1129 = vadd.xlane.f32.xlu0 %v1128
    %v1130 = vpop.xlane.xlu0 %1129
    %v1131 = vsel %vm310, %v1073, 0.0
    %1132 = vadd.xlane.f32.xlu0 %v1131
    %v1133 = vpop.xlane.xlu0 %1132
    %v1134 = vsel %vm310, %v1075, 0.0
    %1135 = vadd.xlane.f32.xlu0 %v1134
    %v1136 = vpop.xlane.xlu0 %1135
    %v1137 = vsel %vm310, %v1077, 0.0
    %1138 = vadd.xlane.f32.xlu0 %v1137
    %v1139 = vpop.xlane.xlu0 %1138
    %v1140 = vsel %vm310, %v1079, 0.0
    %1141 = vadd.xlane.f32.xlu0 %v1140
    %v1142 = vpop.xlane.xlu0 %1141
    %v1143 = vsel %vm310, %v1081, 0.0
    %1144 = vadd.xlane.f32.xlu0 %v1143
    %v1145 = vpop.xlane.xlu0 %1144
    %v1146 = vsel %vm825, %v988, %v1100
    %v1147 = vsel %vm825, %v991, %v1103
    %v1148 = vsel %vm825, %v994, %v1106
    %v1149 = vsel %vm825, %v997, %v1109
    %v1150 = vsel %vm825, %v1000, %v1112
    %v1151 = vsel %vm825, %v1003, %v1115
    %v1152 = vsel %vm825, %v1006, %v1118
    %v1153 = vsel %vm825, %v1009, %v1121
    %v1154 = vsel %vm825, %v1012, %v1124
    %v1155 = vsel %vm825, %v1015, %v1127
    %v1156 = vsel %vm825, %v1018, %v1130
    %v1157 = vsel %vm825, %v1021, %v1133
    %v1158 = vsel %vm825, %v1024, %v1136
    %v1159 = vsel %vm825, %v1027, %v1139
    %v1160 = vsel %vm825, %v1030, %v1142
    %v1161 = vsel %vm825, %v1033, %v1145
    %v1162 = vmul.f32 %v1146, 0.03125
    %v1163 = vmul.f32 %v1147, 0.03125
    %v1164 = vmul.f32 %v1148, 0.03125
    %v1165 = vmul.f32 %v1149, 0.03125
    %v1166 = vmul.f32 %v1150, 0.03125
    %v1167 = vmul.f32 %v1151, 0.03125
    %v1168 = vmul.f32 %v1152, 0.03125
    %v1169 = vmul.f32 %v1153, 0.03125
    %v1170 = vmul.f32 %v1154, 0.03125
    %v1171 = vmul.f32 %v1155, 0.03125
    %v1172 = vmul.f32 %v1156, 0.03125
    %v1173 = vmul.f32 %v1157, 0.03125
    %v1174 = vmul.f32 %v1158, 0.03125
    %v1175 = vmul.f32 %v1159, 0.03125
    %v1176 = vmul.f32 %v1160, 0.03125
    %v1177 = vmul.f32 %v1161, 0.03125
    %1194 = vrot.lane.b32.xlu0 %v1162, 64
    %v1195 = vpop.permute.xlu0 %1194
    %1196 = vrot.lane.b32.xlu0 %v1163, 64
    %v1197 = vpop.permute.xlu0 %1196
    %1198 = vrot.lane.b32.xlu0 %v1164, 64
    %v1199 = vpop.permute.xlu0 %1198
    %1200 = vrot.lane.b32.xlu0 %v1165, 64
    %v1201 = vpop.permute.xlu0 %1200
    %1202 = vrot.lane.b32.xlu0 %v1166, 64
    %v1203 = vpop.permute.xlu0 %1202
    %1204 = vrot.lane.b32.xlu0 %v1167, 64
    %v1205 = vpop.permute.xlu0 %1204
    %1206 = vrot.lane.b32.xlu0 %v1168, 64
    %v1207 = vpop.permute.xlu0 %1206
    %1208 = vrot.lane.b32.xlu0 %v1169, 64
    %v1209 = vpop.permute.xlu0 %1208
    %1210 = vrot.lane.b32.xlu0 %v1170, 64
    %v1211 = vpop.permute.xlu0 %1210
    %1212 = vrot.lane.b32.xlu0 %v1171, 64
    %v1213 = vpop.permute.xlu0 %1212
    %1214 = vrot.lane.b32.xlu0 %v1172, 64
    %v1215 = vpop.permute.xlu0 %1214
    %1216 = vrot.lane.b32.xlu0 %v1173, 64
    %v1217 = vpop.permute.xlu0 %1216
    %1218 = vrot.lane.b32.xlu0 %v1174, 64
    %v1219 = vpop.permute.xlu0 %1218
    %1220 = vrot.lane.b32.xlu0 %v1175, 64
    %v1221 = vpop.permute.xlu0 %1220
    %1222 = vrot.lane.b32.xlu0 %v1176, 64
    %v1223 = vpop.permute.xlu0 %1222
    %1224 = vrot.lane.b32.xlu0 %v1177, 64
    %v1225 = vpop.permute.xlu0 %1224
    %v1242 = vsub.f32 %v805, %v1195
    %v1243 = vsub.f32 %v806, %v1197
    %v1244 = vsub.f32 %v807, %v1199
    %v1245 = vsub.f32 %v808, %v1201
    %v1246 = vsub.f32 %v809, %v1203
    %v1247 = vsub.f32 %v810, %v1205
    %v1248 = vsub.f32 %v811, %v1207
    %v1249 = vsub.f32 %v812, %v1209
    %v1250 = vsub.f32 %v813, %v1211
    %v1251 = vsub.f32 %v814, %v1213
    %v1252 = vsub.f32 %v815, %v1215
    %v1253 = vsub.f32 %v816, %v1217
    %v1254 = vsub.f32 %v817, %v1219
    %v1255 = vsub.f32 %v818, %v1221
    %v1256 = vsub.f32 %v819, %v1223
    %v1257 = vsub.f32 %v820, %v1225
    %1274 = vrot.lane.b32.xlu0 %v1242, 64
    %v1275 = vpop.permute.xlu0 %1274
    %1276 = vrot.lane.b32.xlu0 %v1243, 64
    %v1277 = vpop.permute.xlu0 %1276
    %1278 = vrot.lane.b32.xlu0 %v1244, 64
    %v1279 = vpop.permute.xlu0 %1278
    %1280 = vrot.lane.b32.xlu0 %v1245, 64
    %v1281 = vpop.permute.xlu0 %1280
    %1282 = vrot.lane.b32.xlu0 %v1246, 64
    %v1283 = vpop.permute.xlu0 %1282
    %1284 = vrot.lane.b32.xlu0 %v1247, 64
    %v1285 = vpop.permute.xlu0 %1284
    %1286 = vrot.lane.b32.xlu0 %v1248, 64
    %v1287 = vpop.permute.xlu0 %1286
    %1288 = vrot.lane.b32.xlu0 %v1249, 64
    %v1289 = vpop.permute.xlu0 %1288
    %1290 = vrot.lane.b32.xlu0 %v1250, 64
    %v1291 = vpop.permute.xlu0 %1290
    %1292 = vrot.lane.b32.xlu0 %v1251, 64
    %v1293 = vpop.permute.xlu0 %1292
    %1294 = vrot.lane.b32.xlu0 %v1252, 64
    %v1295 = vpop.permute.xlu0 %1294
    %1296 = vrot.lane.b32.xlu0 %v1253, 64
    %v1297 = vpop.permute.xlu0 %1296
    %1298 = vrot.lane.b32.xlu0 %v1254, 64
    %v1299 = vpop.permute.xlu0 %1298
    %1300 = vrot.lane.b32.xlu0 %v1255, 64
    %v1301 = vpop.permute.xlu0 %1300
    %1302 = vrot.lane.b32.xlu0 %v1256, 64
    %v1303 = vpop.permute.xlu0 %1302
    %1304 = vrot.lane.b32.xlu0 %v1257, 64
    %v1305 = vpop.permute.xlu0 %1304
    %v1322 = vsel %vm825, %v1275, 0.0
    %v1323 = vsel %vm825, %v1277, 0.0
    %v1324 = vsel %vm825, %v1279, 0.0
    %v1325 = vsel %vm825, %v1281, 0.0
    %v1326 = vsel %vm825, %v1283, 0.0
    %v1327 = vsel %vm825, %v1285, 0.0
    %v1328 = vsel %vm825, %v1287, 0.0
    %v1329 = vsel %vm825, %v1289, 0.0
    %v1330 = vsel %vm825, %v1291, 0.0
    %v1331 = vsel %vm825, %v1293, 0.0
    %v1332 = vsel %vm825, %v1295, 0.0
    %v1333 = vsel %vm825, %v1297, 0.0
    %v1334 = vsel %vm825, %v1299, 0.0
    %v1335 = vsel %vm825, %v1301, 0.0
    %v1336 = vsel %vm825, %v1303, 0.0
    %v1337 = vsel %vm825, %v1305, 0.0
    %1354 = vrot.lane.b32.xlu0 %v1322, 64
    %v1355 = vpop.permute.xlu0 %1354
    %1356 = vrot.lane.b32.xlu0 %v1323, 64
    %v1357 = vpop.permute.xlu0 %1356
    %1358 = vrot.lane.b32.xlu0 %v1324, 64
    %v1359 = vpop.permute.xlu0 %1358
    %1360 = vrot.lane.b32.xlu0 %v1325, 64
    %v1361 = vpop.permute.xlu0 %1360
    %1362 = vrot.lane.b32.xlu0 %v1326, 64
    %v1363 = vpop.permute.xlu0 %1362
    %1364 = vrot.lane.b32.xlu0 %v1327, 64
    %v1365 = vpop.permute.xlu0 %1364
    %1366 = vrot.lane.b32.xlu0 %v1328, 64
    %v1367 = vpop.permute.xlu0 %1366
    %1368 = vrot.lane.b32.xlu0 %v1329, 64
    %v1369 = vpop.permute.xlu0 %1368
    %1370 = vrot.lane.b32.xlu0 %v1330, 64
    %v1371 = vpop.permute.xlu0 %1370
    %1372 = vrot.lane.b32.xlu0 %v1331, 64
    %v1373 = vpop.permute.xlu0 %1372
    %1374 = vrot.lane.b32.xlu0 %v1332, 64
    %v1375 = vpop.permute.xlu0 %1374
    %1376 = vrot.lane.b32.xlu0 %v1333, 64
    %v1377 = vpop.permute.xlu0 %1376
    %1378 = vrot.lane.b32.xlu0 %v1334, 64
    %v1379 = vpop.permute.xlu0 %1378
    %1380 = vrot.lane.b32.xlu0 %v1335, 64
    %v1381 = vpop.permute.xlu0 %1380
    %1382 = vrot.lane.b32.xlu0 %v1336, 64
    %v1383 = vpop.permute.xlu0 %1382
    %1384 = vrot.lane.b32.xlu0 %v1337, 64
    %v1385 = vpop.permute.xlu0 %1384
    %v1402 = vsub.f32 %v1242, %v1355
    %v1403 = vsub.f32 %v1243, %v1357
    %v1404 = vsub.f32 %v1244, %v1359
    %v1405 = vsub.f32 %v1245, %v1361
    %v1406 = vsub.f32 %v1246, %v1363
    %v1407 = vsub.f32 %v1247, %v1365
    %v1408 = vsub.f32 %v1248, %v1367
    %v1409 = vsub.f32 %v1249, %v1369
    %v1410 = vsub.f32 %v1250, %v1371
    %v1411 = vsub.f32 %v1251, %v1373
    %v1412 = vsub.f32 %v1252, %v1375
    %v1413 = vsub.f32 %v1253, %v1377
    %v1414 = vsub.f32 %v1254, %v1379
    %v1415 = vsub.f32 %v1255, %v1381
    %v1416 = vsub.f32 %v1256, %v1383
    %v1417 = vsub.f32 %v1257, %v1385
    %v1418 = vmul.f32 %v1322, %v1322
    %v1419 = vmul.f32 %v1323, %v1323
    %v1420 = vmul.f32 %v1324, %v1324
    %v1421 = vmul.f32 %v1325, %v1325
    %v1422 = vmul.f32 %v1326, %v1326
    %v1423 = vmul.f32 %v1327, %v1327
    %v1424 = vmul.f32 %v1328, %v1328
    %v1425 = vmul.f32 %v1329, %v1329
    %v1426 = vmul.f32 %v1330, %v1330
    %v1427 = vmul.f32 %v1331, %v1331
    %v1428 = vmul.f32 %v1332, %v1332
    %v1429 = vmul.f32 %v1333, %v1333
    %v1430 = vmul.f32 %v1334, %v1334
    %v1431 = vmul.f32 %v1335, %v1335
    %v1432 = vmul.f32 %v1336, %v1336
    %v1433 = vmul.f32 %v1337, %v1337
    %v1434 = vsel %vm310, %v1418, 0.0
    %1435 = vadd.xlane.f32.xlu0 %v1434
    %v1436 = vpop.xlane.xlu0 %1435
    %v1437 = vsel %vm310, %v1419, 0.0
    %1438 = vadd.xlane.f32.xlu0 %v1437
    %v1439 = vpop.xlane.xlu0 %1438
    %v1440 = vsel %vm310, %v1420, 0.0
    %1441 = vadd.xlane.f32.xlu0 %v1440
    %v1442 = vpop.xlane.xlu0 %1441
    %v1443 = vsel %vm310, %v1421, 0.0
    %1444 = vadd.xlane.f32.xlu0 %v1443
    %v1445 = vpop.xlane.xlu0 %1444
    %v1446 = vsel %vm310, %v1422, 0.0
    %1447 = vadd.xlane.f32.xlu0 %v1446
    %v1448 = vpop.xlane.xlu0 %1447
    %v1449 = vsel %vm310, %v1423, 0.0
    %1450 = vadd.xlane.f32.xlu0 %v1449
    %v1451 = vpop.xlane.xlu0 %1450
    %v1452 = vsel %vm310, %v1424, 0.0
    %1453 = vadd.xlane.f32.xlu0 %v1452
    %v1454 = vpop.xlane.xlu0 %1453
    %v1455 = vsel %vm310, %v1425, 0.0
    %1456 = vadd.xlane.f32.xlu0 %v1455
    %v1457 = vpop.xlane.xlu0 %1456
    %v1458 = vsel %vm310, %v1426, 0.0
    %1459 = vadd.xlane.f32.xlu0 %v1458
    %v1460 = vpop.xlane.xlu0 %1459
    %v1461 = vsel %vm310, %v1427, 0.0
    %1462 = vadd.xlane.f32.xlu0 %v1461
    %v1463 = vpop.xlane.xlu0 %1462
    %v1464 = vsel %vm310, %v1428, 0.0
    %1465 = vadd.xlane.f32.xlu0 %v1464
    %v1466 = vpop.xlane.xlu0 %1465
    %v1467 = vsel %vm310, %v1429, 0.0
    %1468 = vadd.xlane.f32.xlu0 %v1467
    %v1469 = vpop.xlane.xlu0 %1468
    %v1470 = vsel %vm310, %v1430, 0.0
    %1471 = vadd.xlane.f32.xlu0 %v1470
    %v1472 = vpop.xlane.xlu0 %1471
    %v1473 = vsel %vm310, %v1431, 0.0
    %1474 = vadd.xlane.f32.xlu0 %v1473
    %v1475 = vpop.xlane.xlu0 %1474
    %v1476 = vsel %vm310, %v1432, 0.0
    %1477 = vadd.xlane.f32.xlu0 %v1476
    %v1478 = vpop.xlane.xlu0 %1477
    %v1479 = vsel %vm310, %v1433, 0.0
    %1480 = vadd.xlane.f32.xlu0 %v1479
    %v1481 = vpop.xlane.xlu0 %1480
    %v1482 = vmul.f32 %v1402, %v1402
    %v1483 = vmul.f32 %v1403, %v1403
    %v1484 = vmul.f32 %v1404, %v1404
    %v1485 = vmul.f32 %v1405, %v1405
    %v1486 = vmul.f32 %v1406, %v1406
    %v1487 = vmul.f32 %v1407, %v1407
    %v1488 = vmul.f32 %v1408, %v1408
    %v1489 = vmul.f32 %v1409, %v1409
    %v1490 = vmul.f32 %v1410, %v1410
    %v1491 = vmul.f32 %v1411, %v1411
    %v1492 = vmul.f32 %v1412, %v1412
    %v1493 = vmul.f32 %v1413, %v1413
    %v1494 = vmul.f32 %v1414, %v1414
    %v1495 = vmul.f32 %v1415, %v1415
    %v1496 = vmul.f32 %v1416, %v1416
    %v1497 = vmul.f32 %v1417, %v1417
    %1514 = vrot.lane.b32.xlu0 %v1482, 64
    %v1515 = vpop.permute.xlu0 %1514
    %1516 = vrot.lane.b32.xlu0 %v1483, 64
    %v1517 = vpop.permute.xlu0 %1516
    %1518 = vrot.lane.b32.xlu0 %v1484, 64
    %v1519 = vpop.permute.xlu0 %1518
    %1520 = vrot.lane.b32.xlu0 %v1485, 64
    %v1521 = vpop.permute.xlu0 %1520
    %1522 = vrot.lane.b32.xlu0 %v1486, 64
    %v1523 = vpop.permute.xlu0 %1522
    %1524 = vrot.lane.b32.xlu0 %v1487, 64
    %v1525 = vpop.permute.xlu0 %1524
    %1526 = vrot.lane.b32.xlu0 %v1488, 64
    %v1527 = vpop.permute.xlu0 %1526
    %1528 = vrot.lane.b32.xlu0 %v1489, 64
    %v1529 = vpop.permute.xlu0 %1528
    %1530 = vrot.lane.b32.xlu0 %v1490, 64
    %v1531 = vpop.permute.xlu0 %1530
    %1532 = vrot.lane.b32.xlu0 %v1491, 64
    %v1533 = vpop.permute.xlu0 %1532
    %1534 = vrot.lane.b32.xlu0 %v1492, 64
    %v1535 = vpop.permute.xlu0 %1534
    %1536 = vrot.lane.b32.xlu0 %v1493, 64
    %v1537 = vpop.permute.xlu0 %1536
    %1538 = vrot.lane.b32.xlu0 %v1494, 64
    %v1539 = vpop.permute.xlu0 %1538
    %1540 = vrot.lane.b32.xlu0 %v1495, 64
    %v1541 = vpop.permute.xlu0 %1540
    %1542 = vrot.lane.b32.xlu0 %v1496, 64
    %v1543 = vpop.permute.xlu0 %1542
    %1544 = vrot.lane.b32.xlu0 %v1497, 64
    %v1545 = vpop.permute.xlu0 %1544
    %v1562 = vsel %vm310, %v1515, 0.0
    %1563 = vadd.xlane.f32.xlu0 %v1562
    %v1564 = vpop.xlane.xlu0 %1563
    %v1565 = vsel %vm310, %v1517, 0.0
    %1566 = vadd.xlane.f32.xlu0 %v1565
    %v1567 = vpop.xlane.xlu0 %1566
    %v1568 = vsel %vm310, %v1519, 0.0
    %1569 = vadd.xlane.f32.xlu0 %v1568
    %v1570 = vpop.xlane.xlu0 %1569
    %v1571 = vsel %vm310, %v1521, 0.0
    %1572 = vadd.xlane.f32.xlu0 %v1571
    %v1573 = vpop.xlane.xlu0 %1572
    %v1574 = vsel %vm310, %v1523, 0.0
    %1575 = vadd.xlane.f32.xlu0 %v1574
    %v1576 = vpop.xlane.xlu0 %1575
    %v1577 = vsel %vm310, %v1525, 0.0
    %1578 = vadd.xlane.f32.xlu0 %v1577
    %v1579 = vpop.xlane.xlu0 %1578
    %v1580 = vsel %vm310, %v1527, 0.0
    %1581 = vadd.xlane.f32.xlu0 %v1580
    %v1582 = vpop.xlane.xlu0 %1581
    %v1583 = vsel %vm310, %v1529, 0.0
    %1584 = vadd.xlane.f32.xlu0 %v1583
    %v1585 = vpop.xlane.xlu0 %1584
    %v1586 = vsel %vm310, %v1531, 0.0
    %1587 = vadd.xlane.f32.xlu0 %v1586
    %v1588 = vpop.xlane.xlu0 %1587
    %v1589 = vsel %vm310, %v1533, 0.0
    %1590 = vadd.xlane.f32.xlu0 %v1589
    %v1591 = vpop.xlane.xlu0 %1590
    %v1592 = vsel %vm310, %v1535, 0.0
    %1593 = vadd.xlane.f32.xlu0 %v1592
    %v1594 = vpop.xlane.xlu0 %1593
    %v1595 = vsel %vm310, %v1537, 0.0
    %1596 = vadd.xlane.f32.xlu0 %v1595
    %v1597 = vpop.xlane.xlu0 %1596
    %v1598 = vsel %vm310, %v1539, 0.0
    %1599 = vadd.xlane.f32.xlu0 %v1598
    %v1600 = vpop.xlane.xlu0 %1599
    %v1601 = vsel %vm310, %v1541, 0.0
    %1602 = vadd.xlane.f32.xlu0 %v1601
    %v1603 = vpop.xlane.xlu0 %1602
    %v1604 = vsel %vm310, %v1543, 0.0
    %1605 = vadd.xlane.f32.xlu0 %v1604
    %v1606 = vpop.xlane.xlu0 %1605
    %v1607 = vsel %vm310, %v1545, 0.0
    %1608 = vadd.xlane.f32.xlu0 %v1607
    %v1609 = vpop.xlane.xlu0 %1608
    %v1610 = vsel %vm825, %v1436, %v1564
    %v1611 = vsel %vm825, %v1439, %v1567
    %v1612 = vsel %vm825, %v1442, %v1570
    %v1613 = vsel %vm825, %v1445, %v1573
    %v1614 = vsel %vm825, %v1448, %v1576
    %v1615 = vsel %vm825, %v1451, %v1579
    %v1616 = vsel %vm825, %v1454, %v1582
    %v1617 = vsel %vm825, %v1457, %v1585
    %v1618 = vsel %vm825, %v1460, %v1588
    %v1619 = vsel %vm825, %v1463, %v1591
    %v1620 = vsel %vm825, %v1466, %v1594
    %v1621 = vsel %vm825, %v1469, %v1597
    %v1622 = vsel %vm825, %v1472, %v1600
    %v1623 = vsel %vm825, %v1475, %v1603
    %v1624 = vsel %vm825, %v1478, %v1606
    %v1625 = vsel %vm825, %v1481, %v1609
    %v1626 = vmul.f32 %v1610, 0.03125
    %v1627 = vmul.f32 %v1611, 0.03125
    %v1628 = vmul.f32 %v1612, 0.03125
    %v1629 = vmul.f32 %v1613, 0.03125
    %v1630 = vmul.f32 %v1614, 0.03125
    %v1631 = vmul.f32 %v1615, 0.03125
    %v1632 = vmul.f32 %v1616, 0.03125
    %v1633 = vmul.f32 %v1617, 0.03125
    %v1634 = vmul.f32 %v1618, 0.03125
    %v1635 = vmul.f32 %v1619, 0.03125
    %v1636 = vmul.f32 %v1620, 0.03125
    %v1637 = vmul.f32 %v1621, 0.03125
    %v1638 = vmul.f32 %v1622, 0.03125
    %v1639 = vmul.f32 %v1623, 0.03125
    %v1640 = vmul.f32 %v1624, 0.03125
    %v1641 = vmul.f32 %v1625, 0.03125
    %v1642 = vld [vmem:[%s1 + $0x83] sm:$0x1]
    %v1643 = vld [vmem:[%s1 + $0x84] sm:$0x1]
    %v1644 = vadd.f32 %v1626, 1e-05
    %v1645 = vadd.f32 %v1627, 1e-05
    %v1646 = vadd.f32 %v1628, 1e-05
    %v1647 = vadd.f32 %v1629, 1e-05
    %v1648 = vadd.f32 %v1630, 1e-05
    %v1649 = vadd.f32 %v1631, 1e-05
    %v1650 = vadd.f32 %v1632, 1e-05
    %v1651 = vadd.f32 %v1633, 1e-05
    %v1652 = vadd.f32 %v1634, 1e-05
    %v1653 = vadd.f32 %v1635, 1e-05
    %v1654 = vadd.f32 %v1636, 1e-05
    %v1655 = vadd.f32 %v1637, 1e-05
    %v1656 = vadd.f32 %v1638, 1e-05
    %v1657 = vadd.f32 %v1639, 1e-05
    %v1658 = vadd.f32 %v1640, 1e-05
    %v1659 = vadd.f32 %v1641, 1e-05
    %v1660 = vrsqrt.pop %v1644
    %v1661 = vrsqrt.pop %v1645
    %v1662 = vrsqrt.pop %v1646
    %v1663 = vrsqrt.pop %v1647
    %v1664 = vrsqrt.pop %v1648
    %v1665 = vrsqrt.pop %v1649
    %v1666 = vrsqrt.pop %v1650
    %v1667 = vrsqrt.pop %v1651
    %v1668 = vrsqrt.pop %v1652
    %v1669 = vrsqrt.pop %v1653
    %v1670 = vrsqrt.pop %v1654
    %v1671 = vrsqrt.pop %v1655
    %v1672 = vrsqrt.pop %v1656
    %v1673 = vrsqrt.pop %v1657
    %v1674 = vrsqrt.pop %v1658
    %v1675 = vrsqrt.pop %v1659
    %1692 = vrot.lane.b32.xlu0 %v1660, 64
    %v1693 = vpop.permute.xlu0 %1692
    %1694 = vrot.lane.b32.xlu0 %v1661, 64
    %v1695 = vpop.permute.xlu0 %1694
    %1696 = vrot.lane.b32.xlu0 %v1662, 64
    %v1697 = vpop.permute.xlu0 %1696
    %1698 = vrot.lane.b32.xlu0 %v1663, 64
    %v1699 = vpop.permute.xlu0 %1698
    %1700 = vrot.lane.b32.xlu0 %v1664, 64
    %v1701 = vpop.permute.xlu0 %1700
    %1702 = vrot.lane.b32.xlu0 %v1665, 64
    %v1703 = vpop.permute.xlu0 %1702
    %1704 = vrot.lane.b32.xlu0 %v1666, 64
    %v1705 = vpop.permute.xlu0 %1704
    %1706 = vrot.lane.b32.xlu0 %v1667, 64
    %v1707 = vpop.permute.xlu0 %1706
    %1708 = vrot.lane.b32.xlu0 %v1668, 64
    %v1709 = vpop.permute.xlu0 %1708
    %1710 = vrot.lane.b32.xlu0 %v1669, 64
    %v1711 = vpop.permute.xlu0 %1710
    %1712 = vrot.lane.b32.xlu0 %v1670, 64
    %v1713 = vpop.permute.xlu0 %1712
    %1714 = vrot.lane.b32.xlu0 %v1671, 64
    %v1715 = vpop.permute.xlu0 %1714
    %1716 = vrot.lane.b32.xlu0 %v1672, 64
    %v1717 = vpop.permute.xlu0 %1716
    %1718 = vrot.lane.b32.xlu0 %v1673, 64
    %v1719 = vpop.permute.xlu0 %1718
    %1720 = vrot.lane.b32.xlu0 %v1674, 64
    %v1721 = vpop.permute.xlu0 %1720
    %1722 = vrot.lane.b32.xlu0 %v1675, 64
    %v1723 = vpop.permute.xlu0 %1722
    %v1740 = vmul.f32 %v1242, %v1693
    %v1741 = vmul.f32 %v1243, %v1695
    %v1742 = vmul.f32 %v1244, %v1697
    %v1743 = vmul.f32 %v1245, %v1699
    %v1744 = vmul.f32 %v1246, %v1701
    %v1745 = vmul.f32 %v1247, %v1703
    %v1746 = vmul.f32 %v1248, %v1705
    %v1747 = vmul.f32 %v1249, %v1707
    %v1748 = vmul.f32 %v1250, %v1709
    %v1749 = vmul.f32 %v1251, %v1711
    %v1750 = vmul.f32 %v1252, %v1713
    %v1751 = vmul.f32 %v1253, %v1715
    %v1752 = vmul.f32 %v1254, %v1717
    %v1753 = vmul.f32 %v1255, %v1719
    %v1754 = vmul.f32 %v1256, %v1721
    %v1755 = vmul.f32 %v1257, %v1723
    %v1756 = vlaneseq
    %v1757 = vshrl.u32 %v1756, 7
    %v1758 = vsub.s32 0, %v1757
    %v1759 = vrot.slane %v1642, %v1758
    %1761 = vrot.lane.b32.xlu0 %v1759, 64
    %v1762 = vpop.permute.xlu0 %1761
    %v1764 = vmul.f32 %v1740, %v1762
    %v1765 = vmul.f32 %v1741, %v1762
    %v1766 = vmul.f32 %v1742, %v1762
    %v1767 = vmul.f32 %v1743, %v1762
    %v1768 = vmul.f32 %v1744, %v1762
    %v1769 = vmul.f32 %v1745, %v1762
    %v1770 = vmul.f32 %v1746, %v1762
    %v1771 = vmul.f32 %v1747, %v1762
    %v1772 = vmul.f32 %v1748, %v1762
    %v1773 = vmul.f32 %v1749, %v1762
    %v1774 = vmul.f32 %v1750, %v1762
    %v1775 = vmul.f32 %v1751, %v1762
    %v1776 = vmul.f32 %v1752, %v1762
    %v1777 = vmul.f32 %v1753, %v1762
    %v1778 = vmul.f32 %v1754, %v1762
    %v1779 = vmul.f32 %v1755, %v1762
    %v1780 = vlaneseq
    %v1781 = vshrl.u32 %v1780, 7
    %v1782 = vsub.s32 0, %v1781
    %v1783 = vrot.slane %v1643, %v1782
    %1785 = vrot.lane.b32.xlu0 %v1783, 64
    %v1786 = vpop.permute.xlu0 %1785
    %v1788 = vadd.f32 %v1764, %v1786
    %v1789 = vadd.f32 %v1765, %v1786
    %v1790 = vadd.f32 %v1766, %v1786
    %v1791 = vadd.f32 %v1767, %v1786
    %v1792 = vadd.f32 %v1768, %v1786
    %v1793 = vadd.f32 %v1769, %v1786
    %v1794 = vadd.f32 %v1770, %v1786
    %v1795 = vadd.f32 %v1771, %v1786
    %v1796 = vadd.f32 %v1772, %v1786
    %v1797 = vadd.f32 %v1773, %v1786
    %v1798 = vadd.f32 %v1774, %v1786
    %v1799 = vadd.f32 %v1775, %v1786
    %v1800 = vadd.f32 %v1776, %v1786
    %v1801 = vadd.f32 %v1777, %v1786
    %v1802 = vadd.f32 %v1778, %v1786
    %v1803 = vadd.f32 %v1779, %v1786
    %v1804 = vmax.f32 %v1788, 0.0
    %v1805 = vmax.f32 %v1789, 0.0
    %v1806 = vmax.f32 %v1790, 0.0
    %v1807 = vmax.f32 %v1791, 0.0
    %v1808 = vmax.f32 %v1792, 0.0
    %v1809 = vmax.f32 %v1793, 0.0
    %v1810 = vmax.f32 %v1794, 0.0
    %v1811 = vmax.f32 %v1795, 0.0
    %v1812 = vmax.f32 %v1796, 0.0
    %v1813 = vmax.f32 %v1797, 0.0
    %v1814 = vmax.f32 %v1798, 0.0
    %v1815 = vmax.f32 %v1799, 0.0
    %v1816 = vmax.f32 %v1800, 0.0
    %v1817 = vmax.f32 %v1801, 0.0
    %v1818 = vmax.f32 %v1802, 0.0
    %v1819 = vmax.f32 %v1803, 0.0
    %v1820 = vld [vmem:[%s1 + $0x85] sm:$0x1]
    %v1821 = vlaneseq
    %v1822 = vshrl.u32 %v1821, 7
    %v1823 = vsub.s32 0, %v1822
    %v1824 = vrot.slane %v1820, %v1823
    %1841 = vrot.lane.b32.xlu0 %v1804, 64
    %v1842 = vpop.permute.xlu0 %1841
    %1843 = vrot.lane.b32.xlu0 %v1805, 64
    %v1844 = vpop.permute.xlu0 %1843
    %1845 = vrot.lane.b32.xlu0 %v1806, 64
    %v1846 = vpop.permute.xlu0 %1845
    %1847 = vrot.lane.b32.xlu0 %v1807, 64
    %v1848 = vpop.permute.xlu0 %1847
    %1849 = vrot.lane.b32.xlu0 %v1808, 64
    %v1850 = vpop.permute.xlu0 %1849
    %1851 = vrot.lane.b32.xlu0 %v1809, 64
    %v1852 = vpop.permute.xlu0 %1851
    %1853 = vrot.lane.b32.xlu0 %v1810, 64
    %v1854 = vpop.permute.xlu0 %1853
    %1855 = vrot.lane.b32.xlu0 %v1811, 64
    %v1856 = vpop.permute.xlu0 %1855
    %1857 = vrot.lane.b32.xlu0 %v1812, 64
    %v1858 = vpop.permute.xlu0 %1857
    %1859 = vrot.lane.b32.xlu0 %v1813, 64
    %v1860 = vpop.permute.xlu0 %1859
    %1861 = vrot.lane.b32.xlu0 %v1814, 64
    %v1862 = vpop.permute.xlu0 %1861
    %1863 = vrot.lane.b32.xlu0 %v1815, 64
    %v1864 = vpop.permute.xlu0 %1863
    %1865 = vrot.lane.b32.xlu0 %v1816, 64
    %v1866 = vpop.permute.xlu0 %1865
    %1867 = vrot.lane.b32.xlu0 %v1817, 64
    %v1868 = vpop.permute.xlu0 %1867
    %1869 = vrot.lane.b32.xlu0 %v1818, 64
    %v1870 = vpop.permute.xlu0 %1869
    %1871 = vrot.lane.b32.xlu0 %v1819, 64
    %v1872 = vpop.permute.xlu0 %1871
    %v1873 = vsel %vm310, %v1842, 0
    %v1875 = vsel %vm310, %v1844, 0
    %v1877 = vsel %vm310, %v1846, 0
    %v1879 = vsel %vm310, %v1848, 0
    %v1881 = vsel %vm310, %v1850, 0
    %v1883 = vsel %vm310, %v1852, 0
    %v1885 = vsel %vm310, %v1854, 0
    %v1887 = vsel %vm310, %v1856, 0
    %v1889 = vsel %vm310, %v1858, 0
    %v1891 = vsel %vm310, %v1860, 0
    %v1893 = vsel %vm310, %v1862, 0
    %v1895 = vsel %vm310, %v1864, 0
    %v1897 = vsel %vm310, %v1866, 0
    %v1899 = vsel %vm310, %v1868, 0
    %v1901 = vsel %vm310, %v1870, 0
    %v1903 = vsel %vm310, %v1872, 0
    %1905 = vmatprep.subr.mxu0 0.0
    %1906 = vmatpush1.msra.mxu0 %v265
    %1907 = vmatprep.subr.mxu0 0.0
    %1908 = vmatpush1.msra.mxu0 %v266
    %1909 = vmatprep.subr.mxu0 0.0
    %1910 = vmatpush1.msra.mxu0 %v267
    %1911 = vmatprep.subr.mxu0 0.0
    %1912 = vmatpush1.msra.mxu0 %v268
    %1913 = vmatprep.subr.mxu0 0.0
    %1914 = vmatpush1.msra.mxu0 %v269
    %1915 = vmatprep.subr.mxu0 0.0
    %1916 = vmatpush1.msra.mxu0 %v270
    %1917 = vmatprep.subr.mxu0 0.0
    %1918 = vmatpush1.msra.mxu0 %v271
    %1919 = vmatprep.subr.mxu0 0.0
    %1920 = vmatpush1.msra.mxu0 %v272
    %1921 = vmatprep.subr.mxu0 0.0
    %1922 = vmatpush1.msra.mxu0 0.0
    %1923 = vmatprep.subr.mxu0 0.0
    %1924 = vmatpush1.msra.mxu0 0.0
    %1925 = vmatprep.subr.mxu0 0.0
    %1926 = vmatpush1.msra.mxu0 0.0
    %1927 = vmatprep.subr.mxu0 0.0
    %1928 = vmatpush1.msra.mxu0 0.0
    %1929 = vmatprep.subr.mxu0 0.0
    %1930 = vmatpush1.msra.mxu0 0.0
    %1931 = vmatprep.subr.mxu0 0.0
    %1932 = vmatpush1.msra.mxu0 0.0
    %1933 = vmatprep.subr.mxu0 0.0
    %1934 = vmatpush1.msra.mxu0 0.0
    %1935 = vmatprep.subr.mxu0 0.0
    %1936 = vmatpush1.msra.mxu0 0.0
    %1937 = vmatprep.subr.mxu0 0.0
    %1938 = vmatpush1.msra.mxu0 0.0
    %1939 = vmatprep.subr.mxu0 0.0
    %1940 = vmatpush1.msra.mxu0 0.0
    %1941 = vmatprep.subr.mxu0 0.0
    %1942 = vmatpush1.msra.mxu0 0.0
    %1943 = vmatprep.subr.mxu0 0.0
    %1944 = vmatpush1.msra.mxu0 0.0
    %1945 = vmatprep.subr.mxu0 0.0
    %1946 = vmatpush1.msra.mxu0 0.0
    %1947 = vmatprep.subr.mxu0 0.0
    %1948 = vmatpush1.msra.mxu0 0.0
    %1949 = vmatprep.subr.mxu0 0.0
    %1950 = vmatpush1.msra.mxu0 0.0
    %1951 = vmatprep.subr.mxu0 0.0
    %1952 = vmatpush1.msra.mxu0 0.0
    %1953 = vmatprep.subr.mxu0 0.0
    %1954 = vmatpush1.msra.mxu0 0.0
    %1955 = vmatprep.subr.mxu0 0.0
    %1956 = vmatpush1.msra.mxu0 0.0
    %1957 = vmatprep.subr.mxu0 0.0
    %1958 = vmatpush1.msra.mxu0 0.0
    %1959 = vmatprep.subr.mxu0 0.0
    %1960 = vmatpush1.msra.mxu0 0.0
    %1961 = vmatprep.subr.mxu0 0.0
    %1962 = vmatpush1.msra.mxu0 0.0
    %1963 = vmatprep.subr.mxu0 0.0
    %1964 = vmatpush1.msra.mxu0 0.0
    %1965 = vmatprep.subr.mxu0 0.0
    %1966 = vmatpush1.msra.mxu0 0.0
    %1967 = vmatprep.subr.mxu0 0.0
    %1968 = vmatpush1.msra.mxu0 0.0
    %1969 = vmatprep.mubr.f32.mxu0 0.0
    %1970 = vmatmul.mubr.f32.gmra.mrb[0].mxu0 %v1873
    %v1971 = vpop.f32.mrb[0].mxu0
    %v1972 = vadd.f32 %v1824, %v1971
    %v1973 = vpop.f32.mrb[0].mxu0
    %1974 = vmatprep.mubr.f32.mxu0 0.0
    %1975 = vmatmul.mubr.f32.gmra.mrb[0].mxu0 %v1875
    %v1976 = vpop.f32.mrb[0].mxu0
    %v1977 = vadd.f32 %v1824, %v1976
    %v1978 = vpop.f32.mrb[0].mxu0
    %1979 = vmatprep.mubr.f32.mxu0 0.0
    %1980 = vmatmul.mubr.f32.gmra.mrb[0].mxu0 %v1877
    %v1981 = vpop.f32.mrb[0].mxu0
    %v1982 = vadd.f32 %v1824, %v1981
    %v1983 = vpop.f32.mrb[0].mxu0
    %1984 = vmatprep.mubr.f32.mxu0 0.0
    %1985 = vmatmul.mubr.f32.gmra.mrb[0].mxu0 %v1879
    %v1986 = vpop.f32.mrb[0].mxu0
    %v1987 = vadd.f32 %v1824, %v1986
    %v1988 = vpop.f32.mrb[0].mxu0
    %1989 = vmatprep.mubr.f32.mxu0 0.0
    %1990 = vmatmul.mubr.f32.gmra.mrb[0].mxu0 %v1881
    %v1991 = vpop.f32.mrb[0].mxu0
    %v1992 = vadd.f32 %v1824, %v1991
    %v1993 = vpop.f32.mrb[0].mxu0
    %1994 = vmatprep.mubr.f32.mxu0 0.0
    %1995 = vmatmul.mubr.f32.gmra.mrb[0].mxu0 %v1883
    %v1996 = vpop.f32.mrb[0].mxu0
    %v1997 = vadd.f32 %v1824, %v1996
    %v1998 = vpop.f32.mrb[0].mxu0
    %1999 = vmatprep.mubr.f32.mxu0 0.0
    %2000 = vmatmul.mubr.f32.gmra.mrb[0].mxu0 %v1885
    %v2001 = vpop.f32.mrb[0].mxu0
    %v2002 = vadd.f32 %v1824, %v2001
    %v2003 = vpop.f32.mrb[0].mxu0
    %2004 = vmatprep.mubr.f32.mxu0 0.0
    %2005 = vmatmul.mubr.f32.gmra.mrb[0].mxu0 %v1887
    %v2006 = vpop.f32.mrb[0].mxu0
    %v2007 = vadd.f32 %v1824, %v2006
    %v2008 = vpop.f32.mrb[0].mxu0
    %2009 = vmatprep.mubr.f32.mxu0 0.0
    %2010 = vmatmul.mubr.f32.gmra.mrb[0].mxu0 %v1889
    %v2011 = vpop.f32.mrb[0].mxu0
    %v2012 = vadd.f32 %v1824, %v2011
    %v2013 = vpop.f32.mrb[0].mxu0
    %2014 = vmatprep.mubr.f32.mxu0 0.0
    %2015 = vmatmul.mubr.f32.gmra.mrb[0].mxu0 %v1891
    %v2016 = vpop.f32.mrb[0].mxu0
    %v2017 = vadd.f32 %v1824, %v2016
    %v2018 = vpop.f32.mrb[0].mxu0
    %2019 = vmatprep.mubr.f32.mxu0 0.0
    %2020 = vmatmul.mubr.f32.gmra.mrb[0].mxu0 %v1893
    %v2021 = vpop.f32.mrb[0].mxu0
    %v2022 = vadd.f32 %v1824, %v2021
    %v2023 = vpop.f32.mrb[0].mxu0
    %2024 = vmatprep.mubr.f32.mxu0 0.0
    %2025 = vmatmul.mubr.f32.gmra.mrb[0].mxu0 %v1895
    %v2026 = vpop.f32.mrb[0].mxu0
    %v2027 = vadd.f32 %v1824, %v2026
    %v2028 = vpop.f32.mrb[0].mxu0
    %2029 = vmatprep.mubr.f32.mxu0 0.0
    %2030 = vmatmul.mubr.f32.gmra.mrb[0].mxu0 %v1897
    %v2031 = vpop.f32.mrb[0].mxu0
    %v2032 = vadd.f32 %v1824, %v2031
    %v2033 = vpop.f32.mrb[0].mxu0
    %2034 = vmatprep.mubr.f32.mxu0 0.0
    %2035 = vmatmul.mubr.f32.gmra.mrb[0].mxu0 %v1899
    %v2036 = vpop.f32.mrb[0].mxu0
    %v2037 = vadd.f32 %v1824, %v2036
    %v2038 = vpop.f32.mrb[0].mxu0
    %2039 = vmatprep.mubr.f32.mxu0 0.0
    %2040 = vmatmul.mubr.f32.gmra.mrb[0].mxu0 %v1901
    %v2041 = vpop.f32.mrb[0].mxu0
    %v2042 = vadd.f32 %v1824, %v2041
    %v2043 = vpop.f32.mrb[0].mxu0
    %2044 = vmatprep.mubr.f32.mxu0 0.0
    %2045 = vmatmul.mubr.f32.gmra.mrb[0].mxu0 %v1903
    %v2046 = vpop.f32.mrb[0].mxu0
    %v2047 = vadd.f32 %v1824, %v2046
    %v2048 = vpop.f32.mrb[0].mxu0
    %2049 = vdwg.mxu0
    %v2050 = vmax.f32 %v1972, 0.0
    %v2051 = vmax.f32 %v1977, 0.0
    %v2052 = vmax.f32 %v1982, 0.0
    %v2053 = vmax.f32 %v1987, 0.0
    %v2054 = vmax.f32 %v1992, 0.0
    %v2055 = vmax.f32 %v1997, 0.0
    %v2056 = vmax.f32 %v2002, 0.0
    %v2057 = vmax.f32 %v2007, 0.0
    %v2058 = vmax.f32 %v2012, 0.0
    %v2059 = vmax.f32 %v2017, 0.0
    %v2060 = vmax.f32 %v2022, 0.0
    %v2061 = vmax.f32 %v2027, 0.0
    %v2062 = vmax.f32 %v2032, 0.0
    %v2063 = vmax.f32 %v2037, 0.0
    %v2064 = vmax.f32 %v2042, 0.0
    %v2065 = vmax.f32 %v2047, 0.0
    %v2066 = vld [vmem:[%s1 + $0x86] sm:$0x1]
    %v2067 = vlaneseq
    %v2068 = vshrl.u32 %v2067, 7
    %v2069 = vsub.s32 0, %v2068
    %v2070 = vrot.slane %v2066, %v2069
    %v2072 = vsel %vm310, %v2050, 0
    %v2075 = vsel %vm310, %v2051, 0
    %v2078 = vsel %vm310, %v2052, 0
    %v2081 = vsel %vm310, %v2053, 0
    %v2084 = vsel %vm310, %v2054, 0
    %v2087 = vsel %vm310, %v2055, 0
    %v2090 = vsel %vm310, %v2056, 0
    %v2093 = vsel %vm310, %v2057, 0
    %v2096 = vsel %vm310, %v2058, 0
    %v2099 = vsel %vm310, %v2059, 0
    %v2102 = vsel %vm310, %v2060, 0
    %v2105 = vsel %vm310, %v2061, 0
    %v2108 = vsel %vm310, %v2062, 0
    %v2111 = vsel %vm310, %v2063, 0
    %v2114 = vsel %vm310, %v2064, 0
    %v2117 = vsel %vm310, %v2065, 0
    %2119 = vmatprep.subr.mxu0 0.0
    %2120 = vmatpush1.msra.mxu0 %v265
    %2121 = vmatprep.subr.mxu0 0.0
    %2122 = vmatpush1.msra.mxu0 %v266
    %2123 = vmatprep.subr.mxu0 0.0
    %2124 = vmatpush1.msra.mxu0 %v267
    %2125 = vmatprep.subr.mxu0 0.0
    %2126 = vmatpush1.msra.mxu0 %v268
    %2127 = vmatprep.subr.mxu0 0.0
    %2128 = vmatpush1.msra.mxu0 %v269
    %2129 = vmatprep.subr.mxu0 0.0
    %2130 = vmatpush1.msra.mxu0 %v270
    %2131 = vmatprep.subr.mxu0 0.0
    %2132 = vmatpush1.msra.mxu0 %v271
    %2133 = vmatprep.subr.mxu0 0.0
    %2134 = vmatpush1.msra.mxu0 %v272
    %2135 = vmatprep.subr.mxu0 0.0
    %2136 = vmatpush1.msra.mxu0 0.0
    %2137 = vmatprep.subr.mxu0 0.0
    %2138 = vmatpush1.msra.mxu0 0.0
    %2139 = vmatprep.subr.mxu0 0.0
    %2140 = vmatpush1.msra.mxu0 0.0
    %2141 = vmatprep.subr.mxu0 0.0
    %2142 = vmatpush1.msra.mxu0 0.0
    %2143 = vmatprep.subr.mxu0 0.0
    %2144 = vmatpush1.msra.mxu0 0.0
    %2145 = vmatprep.subr.mxu0 0.0
    %2146 = vmatpush1.msra.mxu0 0.0
    %2147 = vmatprep.subr.mxu0 0.0
    %2148 = vmatpush1.msra.mxu0 0.0
    %2149 = vmatprep.subr.mxu0 0.0
    %2150 = vmatpush1.msra.mxu0 0.0
    %2151 = vmatprep.subr.mxu0 0.0
    %2152 = vmatpush1.msra.mxu0 0.0
    %2153 = vmatprep.subr.mxu0 0.0
    %2154 = vmatpush1.msra.mxu0 0.0
    %2155 = vmatprep.subr.mxu0 0.0
    %2156 = vmatpush1.msra.mxu0 0.0
    %2157 = vmatprep.subr.mxu0 0.0
    %2158 = vmatpush1.msra.mxu0 0.0
    %2159 = vmatprep.subr.mxu0 0.0
    %2160 = vmatpush1.msra.mxu0 0.0
    %2161 = vmatprep.subr.mxu0 0.0
    %2162 = vmatpush1.msra.mxu0 0.0
    %2163 = vmatprep.subr.mxu0 0.0
    %2164 = vmatpush1.msra.mxu0 0.0
    %2165 = vmatprep.subr.mxu0 0.0
    %2166 = vmatpush1.msra.mxu0 0.0
    %2167 = vmatprep.subr.mxu0 0.0
    %2168 = vmatpush1.msra.mxu0 0.0
    %2169 = vmatprep.subr.mxu0 0.0
    %2170 = vmatpush1.msra.mxu0 0.0
    %2171 = vmatprep.subr.mxu0 0.0
    %2172 = vmatpush1.msra.mxu0 0.0
    %2173 = vmatprep.subr.mxu0 0.0
    %2174 = vmatpush1.msra.mxu0 0.0
    %2175 = vmatprep.subr.mxu0 0.0
    %2176 = vmatpush1.msra.mxu0 0.0
    %2177 = vmatprep.subr.mxu0 0.0
    %2178 = vmatpush1.msra.mxu0 0.0
    %2179 = vmatprep.subr.mxu0 0.0
    %2180 = vmatpush1.msra.mxu0 0.0
    %2181 = vmatprep.subr.mxu0 0.0
    %2182 = vmatpush1.msra.mxu0 0.0
    %2183 = vmatprep.mubr.f32.mxu0 0.0
    %2184 = vmatmul.mubr.f32.gmra.mrb[0].mxu0 %v2072
    %v2185 = vpop.f32.mrb[0].mxu0
    %v2186 = vadd.f32 %v2070, %v2185
    %v2187 = vpop.f32.mrb[0].mxu0
    %2188 = vmatprep.mubr.f32.mxu0 0.0
    %2189 = vmatmul.mubr.f32.gmra.mrb[0].mxu0 %v2075
    %v2190 = vpop.f32.mrb[0].mxu0
    %v2191 = vadd.f32 %v2070, %v2190
    %v2192 = vpop.f32.mrb[0].mxu0
    %2193 = vmatprep.mubr.f32.mxu0 0.0
    %2194 = vmatmul.mubr.f32.gmra.mrb[0].mxu0 %v2078
    %v2195 = vpop.f32.mrb[0].mxu0
    %v2196 = vadd.f32 %v2070, %v2195
    %v2197 = vpop.f32.mrb[0].mxu0
    %2198 = vmatprep.mubr.f32.mxu0 0.0
    %2199 = vmatmul.mubr.f32.gmra.mrb[0].mxu0 %v2081
    %v2200 = vpop.f32.mrb[0].mxu0
    %v2201 = vadd.f32 %v2070, %v2200
    %v2202 = vpop.f32.mrb[0].mxu0
    %2203 = vmatprep.mubr.f32.mxu0 0.0
    %2204 = vmatmul.mubr.f32.gmra.mrb[0].mxu0 %v2084
    %v2205 = vpop.f32.mrb[0].mxu0
    %v2206 = vadd.f32 %v2070, %v2205
    %v2207 = vpop.f32.mrb[0].mxu0
    %2208 = vmatprep.mubr.f32.mxu0 0.0
    %2209 = vmatmul.mubr.f32.gmra.mrb[0].mxu0 %v2087
    %v2210 = vpop.f32.mrb[0].mxu0
    %v2211 = vadd.f32 %v2070, %v2210
    %v2212 = vpop.f32.mrb[0].mxu0
    %2213 = vmatprep.mubr.f32.mxu0 0.0
    %2214 = vmatmul.mubr.f32.gmra.mrb[0].mxu0 %v2090
    %v2215 = vpop.f32.mrb[0].mxu0
    %v2216 = vadd.f32 %v2070, %v2215
    %v2217 = vpop.f32.mrb[0].mxu0
    %2218 = vmatprep.mubr.f32.mxu0 0.0
    %2219 = vmatmul.mubr.f32.gmra.mrb[0].mxu0 %v2093
    %v2220 = vpop.f32.mrb[0].mxu0
    %v2221 = vadd.f32 %v2070, %v2220
    %v2222 = vpop.f32.mrb[0].mxu0
    %2223 = vmatprep.mubr.f32.mxu0 0.0
    %2224 = vmatmul.mubr.f32.gmra.mrb[0].mxu0 %v2096
    %v2225 = vpop.f32.mrb[0].mxu0
    %v2226 = vadd.f32 %v2070, %v2225
    %v2227 = vpop.f32.mrb[0].mxu0
    %2228 = vmatprep.mubr.f32.mxu0 0.0
    %2229 = vmatmul.mubr.f32.gmra.mrb[0].mxu0 %v2099
    %v2230 = vpop.f32.mrb[0].mxu0
    %v2231 = vadd.f32 %v2070, %v2230
    %v2232 = vpop.f32.mrb[0].mxu0
    %2233 = vmatprep.mubr.f32.mxu0 0.0
    %2234 = vmatmul.mubr.f32.gmra.mrb[0].mxu0 %v2102
    %v2235 = vpop.f32.mrb[0].mxu0
    %v2236 = vadd.f32 %v2070, %v2235
    %v2237 = vpop.f32.mrb[0].mxu0
    %2238 = vmatprep.mubr.f32.mxu0 0.0
    %2239 = vmatmul.mubr.f32.gmra.mrb[0].mxu0 %v2105
    %v2240 = vpop.f32.mrb[0].mxu0
    %v2241 = vadd.f32 %v2070, %v2240
    %v2242 = vpop.f32.mrb[0].mxu0
    %2243 = vmatprep.mubr.f32.mxu0 0.0
    %2244 = vmatmul.mubr.f32.gmra.mrb[0].mxu0 %v2108
    %v2245 = vpop.f32.mrb[0].mxu0
    %v2246 = vadd.f32 %v2070, %v2245
    %v2247 = vpop.f32.mrb[0].mxu0
    %2248 = vmatprep.mubr.f32.mxu0 0.0
    %2249 = vmatmul.mubr.f32.gmra.mrb[0].mxu0 %v2111
    %v2250 = vpop.f32.mrb[0].mxu0
    %v2251 = vadd.f32 %v2070, %v2250
    %v2252 = vpop.f32.mrb[0].mxu0
    %2253 = vmatprep.mubr.f32.mxu0 0.0
    %2254 = vmatmul.mubr.f32.gmra.mrb[0].mxu0 %v2114
    %v2255 = vpop.f32.mrb[0].mxu0
    %v2256 = vadd.f32 %v2070, %v2255
    %v2257 = vpop.f32.mrb[0].mxu0
    %2258 = vmatprep.mubr.f32.mxu0 0.0
    %2259 = vmatmul.mubr.f32.gmra.mrb[0].mxu0 %v2117
    %v2260 = vpop.f32.mrb[0].mxu0
    %v2261 = vadd.f32 %v2070, %v2260
    %v2262 = vpop.f32.mrb[0].mxu0
    %2263 = vdwg.mxu0
    %2264 = vst [vmem:[#allocation2] sm:$0xff] %v2186
    %2265 = vst [vmem:[#allocation2 + $0x8] sm:$0xff] %v2191
    %2266 = vst [vmem:[#allocation2 + $0x10] sm:$0xff] %v2196
    %2267 = vst [vmem:[#allocation2 + $0x18] sm:$0xff] %v2201
    %2268 = vst [vmem:[#allocation2 + $0x20] sm:$0xff] %v2206
    %2269 = vst [vmem:[#allocation2 + $0x28] sm:$0xff] %v2211
    %2270 = vst [vmem:[#allocation2 + $0x30] sm:$0xff] %v2216
    %2271 = vst [vmem:[#allocation2 + $0x38] sm:$0xff] %v2221
    %2272 = vst [vmem:[#allocation2 + $0x40] sm:$0xff] %v2226
    %2273 = vst [vmem:[#allocation2 + $0x48] sm:$0xff] %v2231
    %2274 = vst [vmem:[#allocation2 + $0x50] sm:$0xff] %v2236
    %2275 = vst [vmem:[#allocation2 + $0x58] sm:$0xff] %v2241
    %2276 = vst [vmem:[#allocation2 + $0x60] sm:$0xff] %v2246
    %2277 = vst [vmem:[#allocation2 + $0x68] sm:$0xff] %v2251
    %2278 = vst [vmem:[#allocation2 + $0x70] sm:$0xff] %v2256
    %2279 = vst [vmem:[#allocation2 + $0x78] sm:$0xff] %v2261
    // Predicated region
    $region10: #{tpu_custom_call.1} parent=1 // pred_check
      _
    $region11: #{tpu_custom_call.1} parent=1 // pred_check_branch
      %2281 = sbr.rel (0) target = $region13
    $region12: #{tpu_custom_call.1} parent=1 // pred_region
      %s2283 = ssub.s32 2048, 2048
      %2284 = vsyncadd [#allocation3], %s2283
      %s2285 = sshll.u32 [#allocation2], 4
      %s2286 = int_to_ptr.vmem [resolvable:$true] %s2285
      %2291 = dma.vmem_to_hbm [thread:$0]  %s2286, 2048, %s2, [#allocation3], 128, 128, 8
    $region13: #{tpu_custom_call.1} parent=1 // pred_fallthru
      _
    // Predicated region
    $region14: #{tpu_custom_call.1} parent=1 // pred_check
      _
    $region15: #{tpu_custom_call.1} parent=1 // pred_check_branch
      %2293 = sbr.rel (0) target = $region17
    $region16: #{tpu_custom_call.1} parent=1 // pred_region
      %2294 = dma.done [#allocation3], 2048
    $region17: #{tpu_custom_call.1} parent=1 // pred_fallthru
      _
    %2295 = vsyncpa [#allocation3], 1

</llo_original>
